<compile_context>
chip_gen: v7x
topology: tpu7x:2x2x1
jax: 0.10.0
libtpu: 0.0.40
codegen_flags: <defaults>
</compile_context>

<pallas_src>
import functools

import jax
import jax.numpy as jnp
from jax import lax
from jax.experimental import pallas as pl
from jax.experimental.pallas import tpu as pltpu


def _gpvae_prior_kernel(t_ref, eps_ref, zgp_ref, k_ref, a_scr,
                        *, length_scale, sigma, alpha, unroll):
    T = k_ref.shape[-1]
    rows = lax.broadcasted_iota(jnp.int32, (T, T), 0)
    cols = lax.broadcasted_iota(jnp.int32, (T, T), 1)
    row_i = rows[:, :1]   # (T, 1)
    col_j = cols[:1, :]   # (1, T)

    # ---- Cauchy kernel matrix + alpha * I (elementwise, VPU) ----------------
    t_row = t_ref[0]                                              # (1, T)
    # Derive the (T,1) column from the row via a masked lane-reduce (no extra DMA).
    t_col = jnp.sum(jnp.where(rows == cols, t_row, 0.0),
                    axis=1, keepdims=True)                        # (T, 1)
    dist_sq = (t_col - t_row) ** 2                                # (T, T)
    K = sigma / (1.0 + dist_sq / (length_scale ** 2))
    K = K + jnp.where(rows == cols, jnp.float32(alpha), jnp.float32(0.0))
    k_ref[0] = K.astype(k_ref.dtype)

    # ---- In-place Cholesky: masked right-looking rank-1 updates --------------
    # Column k of the working matrix is overwritten with column k of L at step k;
    # the trailing Schur update never touches already-written columns, so after
    # T steps a_scr holds L (zeros above the diagonal).
    a_scr[...] = K.astype(jnp.float32)

    def chol_step(k, carry):
        A = a_scr[...]
        # column k / row k of the trailing (still symmetric) block
        colk = jnp.sum(jnp.where(cols == k, A, 0.0), axis=1, keepdims=True)   # (T,1)
        rowk = jnp.sum(jnp.where(rows == k, A, 0.0), axis=0, keepdims=True)   # (1,T)
        pivot = jnp.sum(jnp.where(col_j == k, rowk, 0.0),
                        axis=1, keepdims=True)                                # (1,1)
        pivot = jnp.maximum(pivot, jnp.float32(1e-12))   # f32 safety floor
        inv_s = lax.rsqrt(pivot)                         # EUP
        s = pivot * inv_s                                # = sqrt(pivot)
        # column k of L: diag = sqrt(pivot), below-diag = A[i,k] * rsqrt(pivot)
        lcol = jnp.where(row_i > k, colk * inv_s,
                         jnp.where(row_i == k, s, 0.0))                       # (T,1)
        u_col = jnp.where(row_i > k, lcol, 0.0)                               # (T,1)
        u_row = jnp.where(col_j > k, rowk * inv_s, 0.0)                       # (1,T)
        # write L column k in place; Schur-complement update on the trailing block
        a_scr[...] = jnp.where(cols == k, lcol, A - u_col * u_row)
        return carry

    lax.fori_loop(0, T, chol_step, 0, unroll=unroll)

    # ---- z_gp = L @ eps (MXU, lane-dense D_pad) ------------------------------
    L = a_scr[...]
    zgp_ref[0] = jnp.dot(L, eps_ref[0],
                         preferred_element_type=jnp.float32).astype(zgp_ref.dtype)


def gpvae_prior_forward(times, mu, logvar, eps, *, length_scale, sigma, alpha=1e-6):
    """Pallas equivalent of GPVAEPrior.forward(times, mu, logvar).

    Accepts unbatched inputs (times (T,), mu/logvar/eps (T, D)) like the PyTorch
    module, or batched inputs (times (B, T), mu/logvar/eps (B, T, D)).
    `eps` plays the role of torch.randn_like(mu) (generated by the caller);
    `logvar` is accepted to mirror the PyTorch signature but is unused, exactly
    as in the reference forward.
    """
    del logvar
    squeeze = (times.ndim == 1)
    if squeeze:
        times = times[None]
        mu = mu[None]
        eps = eps[None]
    B, T = times.shape
    D = mu.shape[-1]

    # Lane-dense padding of the latent dim for the L @ eps matmul / z_gp stores.
    D_pad = max(128, ((D + 127) // 128) * 128)
    eps = eps.astype(jnp.float32)
    if D_pad != D:
        eps_p = jnp.zeros((B, T, D_pad), jnp.float32).at[:, :, :D].set(eps)
    else:
        eps_p = eps
    t_row = times.astype(jnp.float32).reshape(B, 1, T)

    kernel = functools.partial(
        _gpvae_prior_kernel,
        length_scale=float(length_scale),
        sigma=float(sigma),
        alpha=float(alpha),
        unroll=bool(T <= 16),
    )

    z_pad, K = pl.pallas_call(
        kernel,
        out_shape=(jax.ShapeDtypeStruct((B, T, D_pad), jnp.float32),
                   jax.ShapeDtypeStruct((B, T, T), jnp.float32)),
        grid=(B,),
        in_specs=[pl.BlockSpec((1, 1, T), lambda b: (b, 0, 0)),
                  pl.BlockSpec((1, T, D_pad), lambda b: (b, 0, 0))],
        out_specs=(pl.BlockSpec((1, T, D_pad), lambda b: (b, 0, 0)),
                   pl.BlockSpec((1, T, T), lambda b: (b, 0, 0))),
        scratch_shapes=[pltpu.VMEM((T, T), jnp.float32)],   # in-place A / L buffer
        compiler_params=pltpu.CompilerParams(
            dimension_semantics=("parallel",)),
    )(t_row, eps_p)

    z_gp = z_pad[:, :, :D]
    if squeeze:
        z_gp, K = z_gp[0], K[0]
    return z_gp, K


if __name__ == "__main__":
    # deterministic "config": config.length_scale, config.sigma
    LENGTH_SCALE = 1.5
    SIGMA = 1.05
    ALPHA = 1e-6

    B, T, D = 4, 8, 32   # batch of 4 sequences, 8 time points, latent dim 32

    key = jax.random.PRNGKey(0)
    k_t, k_mu, k_lv, k_eps = jax.random.split(key, 4)
    times = jnp.sort(jax.random.uniform(k_t, (B, T), jnp.float32) * 10.0, axis=-1)
    mu = jax.random.normal(k_mu, (B, T, D), jnp.float32)
    logvar = jax.random.normal(k_lv, (B, T, D), jnp.float32)
    eps = jax.random.normal(k_eps, (B, T, D), jnp.float32)   # torch.randn_like(mu)

    # Batched call (parallel grid over B).
    z_gp, K = gpvae_prior_forward(times, mu, logvar, eps,
                                  length_scale=LENGTH_SCALE,
                                  sigma=SIGMA, alpha=ALPHA)
    jax.block_until_ready((z_gp, K))

    # Pure-JAX reference check.
    dist_sq = (times[:, :, None] - times[:, None, :]) ** 2
    K_ref = SIGMA / (1.0 + dist_sq / LENGTH_SCALE ** 2) + ALPHA * jnp.eye(T)[None]
    L_ref = jnp.linalg.cholesky(K_ref)
    z_ref = jnp.einsum('bij,bjd->bid', L_ref, eps)
    assert jnp.allclose(K, K_ref, rtol=1e-5, atol=1e-5)
    assert jnp.allclose(z_gp, z_ref, rtol=1e-4, atol=1e-4)

    # Unbatched path (original module signature).
    z1, K1 = gpvae_prior_forward(times[0], mu[0], logvar[0], eps[0],
                                 length_scale=LENGTH_SCALE,
                                 sigma=SIGMA, alpha=ALPHA)
    jax.block_until_ready((z1, K1))
    assert jnp.allclose(K1, K_ref[0], rtol=1e-5, atol=1e-5)
    assert jnp.allclose(z1, z_ref[0], rtol=1e-4, atol=1e-4)

    print("KERNEL_OK")
</pallas_src>

<mosaic_0001>
module attributes {stable_mosaic.version = 11 : i64} {
  func.func @_gpvae_prior_kernel(%arg0: i32, %arg1: memref<1x1x8xf32, #tpu.memory_space<vmem>>, %arg2: memref<1x8x128xf32, #tpu.memory_space<vmem>>, %arg3: memref<1x8x128xf32, #tpu.memory_space<vmem>>, %arg4: memref<1x8x8xf32, #tpu.memory_space<vmem>>, %arg5: memref<8x8xf32, #tpu.memory_space<vmem>>) attributes {dimension_semantics = [#tpu.dimension_semantics<parallel>], iteration_bounds = array<i64: 4>, scalar_prefetch = 0 : i64, scratch_operands = 1 : i64, tpu.core_type = #tpu.core_type<tc>, window_params = [{transform_indices = @transform_0, window_bounds = array<i64: 1, 1, 8>}, {transform_indices = @transform_1, window_bounds = array<i64: 1, 8, 128>}, {transform_indices = @transform_2, window_bounds = array<i64: 1, 8, 128>}, {transform_indices = @transform_3, window_bounds = array<i64: 1, 8, 8>}]} {
    %0 = tpu.iota {dimensions = array<i32: 0>} : vector<8x8xi32>
    %1 = tpu.iota {dimensions = array<i32: 1>} : vector<8x8xi32>
    %2 = vector.extract_strided_slice %0 {offsets = [0, 0], sizes = [8, 1], strides = [1, 1]} : vector<8x8xi32> to vector<8x1xi32>
    %3 = vector.extract_strided_slice %1 {offsets = [0, 0], sizes = [1, 8], strides = [1, 1]} : vector<8x8xi32> to vector<1x8xi32>
    %c0 = arith.constant 0 : index
    %c0_0 = arith.constant 0 : index
    %c0_1 = arith.constant 0 : index
    %4 = vector.load %arg1[%c0, %c0_0, %c0_1] : memref<1x1x8xf32, #tpu.memory_space<vmem>>, vector<1x1x8xf32>
    %5 = vector.shape_cast %4 : vector<1x1x8xf32> to vector<1x8xf32>
    %6 = arith.cmpi eq, %0, %1 : vector<8x8xi32>
    %cst = arith.constant 0.000000e+00 : f32
    %7 = vector.shape_cast %5 : vector<1x8xf32> to vector<1x8xf32>
    %8 = vector.broadcast %7 : vector<1x8xf32> to vector<8x8xf32>
    %9 = vector.broadcast %cst : f32 to vector<8x8xf32>
    %10 = arith.select %6, %8, %9 : vector<8x8xi1>, vector<8x8xf32>
    %cst_2 = arith.constant dense<0.000000e+00> : vector<8xf32>
    %11 = vector.multi_reduction <add>, %10, %cst_2 [1] : vector<8x8xf32> to vector<8xf32>
    %12 = vector.shape_cast %11 : vector<8xf32> to vector<8x1xf32>
    %13 = vector.broadcast %12 : vector<8x1xf32> to vector<8x8xf32>
    %14 = vector.broadcast %5 : vector<1x8xf32> to vector<8x8xf32>
    %15 = arith.subf %13, %14 : vector<8x8xf32>
    %16 = arith.mulf %15, %15 : vector<8x8xf32>
    %cst_3 = arith.constant 2.250000e+00 : f32
    %17 = vector.broadcast %cst_3 : f32 to vector<8x8xf32>
    %18 = arith.divf %16, %17 : vector<8x8xf32>
    %cst_4 = arith.constant 1.000000e+00 : f32
    %19 = vector.broadcast %cst_4 : f32 to vector<8x8xf32>
    %20 = arith.addf %19, %18 : vector<8x8xf32>
    %cst_5 = arith.constant 1.050000e+00 : f32
    %21 = vector.broadcast %cst_5 : f32 to vector<8x8xf32>
    %22 = arith.divf %21, %20 : vector<8x8xf32>
    %23 = arith.cmpi eq, %0, %1 : vector<8x8xi32>
    %cst_6 = arith.constant 9.99999997E-7 : f32
    %cst_7 = arith.constant 0.000000e+00 : f32
    %24 = vector.broadcast %cst_6 : f32 to vector<8x8xf32>
    %25 = vector.broadcast %cst_7 : f32 to vector<8x8xf32>
    %26 = arith.select %23, %24, %25 : vector<8x8xi1>, vector<8x8xf32>
    %27 = arith.addf %22, %26 : vector<8x8xf32>
    %c0_8 = arith.constant 0 : index
    %c0_9 = arith.constant 0 : index
    %c0_10 = arith.constant 0 : index
    %28 = vector.load %arg4[%c0_8, %c0_9, %c0_10] : memref<1x8x8xf32, #tpu.memory_space<vmem>>, vector<1x8x8xf32>
    %29 = vector.shape_cast %28 : vector<1x8x8xf32> to vector<8x8xf32>
    %30 = vector.shape_cast %27 : vector<8x8xf32> to vector<1x8x8xf32>
    tpu.vector_store %arg4[%c0_8, %c0_9, %c0_10], %30 {strides = array<i32>} : memref<1x8x8xf32, #tpu.memory_space<vmem>>, vector<1x8x8xf32>,
    %c0_11 = arith.constant 0 : index
    %c0_12 = arith.constant 0 : index
    %31 = vector.load %arg5[%c0_11, %c0_12] : memref<8x8xf32, #tpu.memory_space<vmem>>, vector<8x8xf32>
    tpu.vector_store %arg5[%c0_11, %c0_12], %27 {strides = array<i32>} : memref<8x8xf32, #tpu.memory_space<vmem>>, vector<8x8xf32>,
    %c0_i32 = arith.constant 0 : i32
    %c0_13 = arith.constant 0 : index
    %c0_14 = arith.constant 0 : index
    %32 = vector.load %arg5[%c0_13, %c0_14] : memref<8x8xf32, #tpu.memory_space<vmem>>, vector<8x8xf32>
    %33 = vector.broadcast %c0_i32 : i32 to vector<8x8xi32>
    %34 = arith.cmpi eq, %1, %33 : vector<8x8xi32>
    %cst_15 = arith.constant 0.000000e+00 : f32
    %35 = vector.broadcast %cst_15 : f32 to vector<8x8xf32>
    %36 = arith.select %34, %32, %35 : vector<8x8xi1>, vector<8x8xf32>
    %cst_16 = arith.constant dense<0.000000e+00> : vector<8xf32>
    %37 = vector.multi_reduction <add>, %36, %cst_16 [1] : vector<8x8xf32> to vector<8xf32>
    %38 = vector.shape_cast %37 : vector<8xf32> to vector<8x1xf32>
    %39 = vector.broadcast %c0_i32 : i32 to vector<8x8xi32>
    %40 = arith.cmpi eq, %0, %39 : vector<8x8xi32>
    %cst_17 = arith.constant 0.000000e+00 : f32
    %41 = vector.broadcast %cst_17 : f32 to vector<8x8xf32>
    %42 = arith.select %40, %32, %41 : vector<8x8xi1>, vector<8x8xf32>
    %cst_18 = arith.constant dense<0.000000e+00> : vector<8xf32>
    %43 = vector.multi_reduction <add>, %42, %cst_18 [0] : vector<8x8xf32> to vector<8xf32>
    %44 = vector.shape_cast %43 : vector<8xf32> to vector<1x8xf32>
    %45 = vector.broadcast %c0_i32 : i32 to vector<1x8xi32>
    %46 = arith.cmpi eq, %3, %45 : vector<1x8xi32>
    %cst_19 = arith.constant 0.000000e+00 : f32
    %47 = vector.broadcast %cst_19 : f32 to vector<1x8xf32>
    %48 = arith.select %46, %44, %47 : vector<1x8xi1>, vector<1x8xf32>
    %cst_20 = arith.constant dense<0.000000e+00> : vector<1xf32>
    %49 = vector.multi_reduction <add>, %48, %cst_20 [1] : vector<1x8xf32> to vector<1xf32>
    %50 = vector.shape_cast %49 : vector<1xf32> to vector<1x1xf32>
    %cst_21 = arith.constant 9.99999996E-13 : f32
    %51 = vector.broadcast %cst_21 : f32 to vector<1x1xf32>
    %52 = arith.maximumf %50, %51 : vector<1x1xf32>
    %53 = math.rsqrt %52 : vector<1x1xf32>
    %54 = arith.mulf %52, %53 : vector<1x1xf32>
    %55 = vector.broadcast %c0_i32 : i32 to vector<8x1xi32>
    %56 = arith.cmpi sgt, %2, %55 : vector<8x1xi32>
    %57 = vector.broadcast %53 : vector<1x1xf32> to vector<8x1xf32>
    %58 = arith.mulf %38, %57 : vector<8x1xf32>
    %59 = vector.broadcast %c0_i32 : i32 to vector<8x1xi32>
    %60 = arith.cmpi eq, %2, %59 : vector<8x1xi32>
    %cst_22 = arith.constant 0.000000e+00 : f32
    %61 = vector.shape_cast %54 : vector<1x1xf32> to vector<1x1xf32>
    %62 = vector.broadcast %61 : vector<1x1xf32> to vector<8x1xf32>
    %63 = vector.broadcast %cst_22 : f32 to vector<8x1xf32>
    %64 = arith.select %60, %62, %63 : vector<8x1xi1>, vector<8x1xf32>
    %65 = arith.select %56, %58, %64 : vector<8x1xi1>, vector<8x1xf32>
    %66 = vector.broadcast %c0_i32 : i32 to vector<8x1xi32>
    %67 = arith.cmpi sgt, %2, %66 : vector<8x1xi32>
    %cst_23 = arith.constant 0.000000e+00 : f32
    %68 = vector.broadcast %cst_23 : f32 to vector<8x1xf32>
    %69 = arith.select %67, %65, %68 : vector<8x1xi1>, vector<8x1xf32>
    %70 = vector.broadcast %c0_i32 : i32 to vector<1x8xi32>
    %71 = arith.cmpi sgt, %3, %70 : vector<1x8xi32>
    %72 = vector.broadcast %53 : vector<1x1xf32> to vector<1x8xf32>
    %73 = arith.mulf %44, %72 : vector<1x8xf32>
    %cst_24 = arith.constant 0.000000e+00 : f32
    %74 = vector.broadcast %cst_24 : f32 to vector<1x8xf32>
    %75 = arith.select %71, %73, %74 : vector<1x8xi1>, vector<1x8xf32>
    %76 = vector.broadcast %c0_i32 : i32 to vector<8x8xi32>
    %77 = arith.cmpi eq, %1, %76 : vector<8x8xi32>
    %78 = vector.broadcast %69 : vector<8x1xf32> to vector<8x8xf32>
    %79 = vector.broadcast %75 : vector<1x8xf32> to vector<8x8xf32>
    %80 = arith.mulf %78, %79 : vector<8x8xf32>
    %81 = arith.subf %32, %80 : vector<8x8xf32>
    %82 = vector.shape_cast %65 : vector<8x1xf32> to vector<8x1xf32>
    %83 = vector.broadcast %82 : vector<8x1xf32> to vector<8x8xf32>
    %84 = arith.select %77, %83, %81 : vector<8x8xi1>, vector<8x8xf32>
    %c0_25 = arith.constant 0 : index
    %c0_26 = arith.constant 0 : index
    %85 = vector.load %arg5[%c0_25, %c0_26] : memref<8x8xf32, #tpu.memory_space<vmem>>, vector<8x8xf32>
    tpu.vector_store %arg5[%c0_25, %c0_26], %84 {strides = array<i32>} : memref<8x8xf32, #tpu.memory_space<vmem>>, vector<8x8xf32>,
    %c1_i32 = arith.constant 1 : i32
    %c0_27 = arith.constant 0 : index
    %c0_28 = arith.constant 0 : index
    %86 = vector.load %arg5[%c0_27, %c0_28] : memref<8x8xf32, #tpu.memory_space<vmem>>, vector<8x8xf32>
    %87 = vector.broadcast %c1_i32 : i32 to vector<8x8xi32>
    %88 = arith.cmpi eq, %1, %87 : vector<8x8xi32>
    %cst_29 = arith.constant 0.000000e+00 : f32
    %89 = vector.broadcast %cst_29 : f32 to vector<8x8xf32>
    %90 = arith.select %88, %86, %89 : vector<8x8xi1>, vector<8x8xf32>
    %cst_30 = arith.constant dense<0.000000e+00> : vector<8xf32>
    %91 = vector.multi_reduction <add>, %90, %cst_30 [1] : vector<8x8xf32> to vector<8xf32>
    %92 = vector.shape_cast %91 : vector<8xf32> to vector<8x1xf32>
    %93 = vector.broadcast %c1_i32 : i32 to vector<8x8xi32>
    %94 = arith.cmpi eq, %0, %93 : vector<8x8xi32>
    %cst_31 = arith.constant 0.000000e+00 : f32
    %95 = vector.broadcast %cst_31 : f32 to vector<8x8xf32>
    %96 = arith.select %94, %86, %95 : vector<8x8xi1>, vector<8x8xf32>
    %cst_32 = arith.constant dense<0.000000e+00> : vector<8xf32>
    %97 = vector.multi_reduction <add>, %96, %cst_32 [0] : vector<8x8xf32> to vector<8xf32>
    %98 = vector.shape_cast %97 : vector<8xf32> to vector<1x8xf32>
    %99 = vector.broadcast %c1_i32 : i32 to vector<1x8xi32>
    %100 = arith.cmpi eq, %3, %99 : vector<1x8xi32>
    %cst_33 = arith.constant 0.000000e+00 : f32
    %101 = vector.broadcast %cst_33 : f32 to vector<1x8xf32>
    %102 = arith.select %100, %98, %101 : vector<1x8xi1>, vector<1x8xf32>
    %cst_34 = arith.constant dense<0.000000e+00> : vector<1xf32>
    %103 = vector.multi_reduction <add>, %102, %cst_34 [1] : vector<1x8xf32> to vector<1xf32>
    %104 = vector.shape_cast %103 : vector<1xf32> to vector<1x1xf32>
    %cst_35 = arith.constant 9.99999996E-13 : f32
    %105 = vector.broadcast %cst_35 : f32 to vector<1x1xf32>
    %106 = arith.maximumf %104, %105 : vector<1x1xf32>
    %107 = math.rsqrt %106 : vector<1x1xf32>
    %108 = arith.mulf %106, %107 : vector<1x1xf32>
    %109 = vector.broadcast %c1_i32 : i32 to vector<8x1xi32>
    %110 = arith.cmpi sgt, %2, %109 : vector<8x1xi32>
    %111 = vector.broadcast %107 : vector<1x1xf32> to vector<8x1xf32>
    %112 = arith.mulf %92, %111 : vector<8x1xf32>
    %113 = vector.broadcast %c1_i32 : i32 to vector<8x1xi32>
    %114 = arith.cmpi eq, %2, %113 : vector<8x1xi32>
    %cst_36 = arith.constant 0.000000e+00 : f32
    %115 = vector.shape_cast %108 : vector<1x1xf32> to vector<1x1xf32>
    %116 = vector.broadcast %115 : vector<1x1xf32> to vector<8x1xf32>
    %117 = vector.broadcast %cst_36 : f32 to vector<8x1xf32>
    %118 = arith.select %114, %116, %117 : vector<8x1xi1>, vector<8x1xf32>
    %119 = arith.select %110, %112, %118 : vector<8x1xi1>, vector<8x1xf32>
    %120 = vector.broadcast %c1_i32 : i32 to vector<8x1xi32>
    %121 = arith.cmpi sgt, %2, %120 : vector<8x1xi32>
    %cst_37 = arith.constant 0.000000e+00 : f32
    %122 = vector.broadcast %cst_37 : f32 to vector<8x1xf32>
    %123 = arith.select %121, %119, %122 : vector<8x1xi1>, vector<8x1xf32>
    %124 = vector.broadcast %c1_i32 : i32 to vector<1x8xi32>
    %125 = arith.cmpi sgt, %3, %124 : vector<1x8xi32>
    %126 = vector.broadcast %107 : vector<1x1xf32> to vector<1x8xf32>
    %127 = arith.mulf %98, %126 : vector<1x8xf32>
    %cst_38 = arith.constant 0.000000e+00 : f32
    %128 = vector.broadcast %cst_38 : f32 to vector<1x8xf32>
    %129 = arith.select %125, %127, %128 : vector<1x8xi1>, vector<1x8xf32>
    %130 = vector.broadcast %c1_i32 : i32 to vector<8x8xi32>
    %131 = arith.cmpi eq, %1, %130 : vector<8x8xi32>
    %132 = vector.broadcast %123 : vector<8x1xf32> to vector<8x8xf32>
    %133 = vector.broadcast %129 : vector<1x8xf32> to vector<8x8xf32>
    %134 = arith.mulf %132, %133 : vector<8x8xf32>
    %135 = arith.subf %86, %134 : vector<8x8xf32>
    %136 = vector.shape_cast %119 : vector<8x1xf32> to vector<8x1xf32>
    %137 = vector.broadcast %136 : vector<8x1xf32> to vector<8x8xf32>
    %138 = arith.select %131, %137, %135 : vector<8x8xi1>, vector<8x8xf32>
    %c0_39 = arith.constant 0 : index
    %c0_40 = arith.constant 0 : index
    %139 = vector.load %arg5[%c0_39, %c0_40] : memref<8x8xf32, #tpu.memory_space<vmem>>, vector<8x8xf32>
    tpu.vector_store %arg5[%c0_39, %c0_40], %138 {strides = array<i32>} : memref<8x8xf32, #tpu.memory_space<vmem>>, vector<8x8xf32>,
    %c2_i32 = arith.constant 2 : i32
    %c0_41 = arith.constant 0 : index
    %c0_42 = arith.constant 0 : index
    %140 = vector.load %arg5[%c0_41, %c0_42] : memref<8x8xf32, #tpu.memory_space<vmem>>, vector<8x8xf32>
    %141 = vector.broadcast %c2_i32 : i32 to vector<8x8xi32>
    %142 = arith.cmpi eq, %1, %141 : vector<8x8xi32>
    %cst_43 = arith.constant 0.000000e+00 : f32
    %143 = vector.broadcast %cst_43 : f32 to vector<8x8xf32>
    %144 = arith.select %142, %140, %143 : vector<8x8xi1>, vector<8x8xf32>
    %cst_44 = arith.constant dense<0.000000e+00> : vector<8xf32>
    %145 = vector.multi_reduction <add>, %144, %cst_44 [1] : vector<8x8xf32> to vector<8xf32>
    %146 = vector.shape_cast %145 : vector<8xf32> to vector<8x1xf32>
    %147 = vector.broadcast %c2_i32 : i32 to vector<8x8xi32>
    %148 = arith.cmpi eq, %0, %147 : vector<8x8xi32>
    %cst_45 = arith.constant 0.000000e+00 : f32
    %149 = vector.broadcast %cst_45 : f32 to vector<8x8xf32>
    %150 = arith.select %148, %140, %149 : vector<8x8xi1>, vector<8x8xf32>
    %cst_46 = arith.constant dense<0.000000e+00> : vector<8xf32>
    %151 = vector.multi_reduction <add>, %150, %cst_46 [0] : vector<8x8xf32> to vector<8xf32>
    %152 = vector.shape_cast %151 : vector<8xf32> to vector<1x8xf32>
    %153 = vector.broadcast %c2_i32 : i32 to vector<1x8xi32>
    %154 = arith.cmpi eq, %3, %153 : vector<1x8xi32>
    %cst_47 = arith.constant 0.000000e+00 : f32
    %155 = vector.broadcast %cst_47 : f32 to vector<1x8xf32>
    %156 = arith.select %154, %152, %155 : vector<1x8xi1>, vector<1x8xf32>
    %cst_48 = arith.constant dense<0.000000e+00> : vector<1xf32>
    %157 = vector.multi_reduction <add>, %156, %cst_48 [1] : vector<1x8xf32> to vector<1xf32>
    %158 = vector.shape_cast %157 : vector<1xf32> to vector<1x1xf32>
    %cst_49 = arith.constant 9.99999996E-13 : f32
    %159 = vector.broadcast %cst_49 : f32 to vector<1x1xf32>
    %160 = arith.maximumf %158, %159 : vector<1x1xf32>
    %161 = math.rsqrt %160 : vector<1x1xf32>
    %162 = arith.mulf %160, %161 : vector<1x1xf32>
    %163 = vector.broadcast %c2_i32 : i32 to vector<8x1xi32>
    %164 = arith.cmpi sgt, %2, %163 : vector<8x1xi32>
    %165 = vector.broadcast %161 : vector<1x1xf32> to vector<8x1xf32>
    %166 = arith.mulf %146, %165 : vector<8x1xf32>
    %167 = vector.broadcast %c2_i32 : i32 to vector<8x1xi32>
    %168 = arith.cmpi eq, %2, %167 : vector<8x1xi32>
    %cst_50 = arith.constant 0.000000e+00 : f32
    %169 = vector.shape_cast %162 : vector<1x1xf32> to vector<1x1xf32>
    %170 = vector.broadcast %169 : vector<1x1xf32> to vector<8x1xf32>
    %171 = vector.broadcast %cst_50 : f32 to vector<8x1xf32>
    %172 = arith.select %168, %170, %171 : vector<8x1xi1>, vector<8x1xf32>
    %173 = arith.select %164, %166, %172 : vector<8x1xi1>, vector<8x1xf32>
    %174 = vector.broadcast %c2_i32 : i32 to vector<8x1xi32>
    %175 = arith.cmpi sgt, %2, %174 : vector<8x1xi32>
    %cst_51 = arith.constant 0.000000e+00 : f32
    %176 = vector.broadcast %cst_51 : f32 to vector<8x1xf32>
    %177 = arith.select %175, %173, %176 : vector<8x1xi1>, vector<8x1xf32>
    %178 = vector.broadcast %c2_i32 : i32 to vector<1x8xi32>
    %179 = arith.cmpi sgt, %3, %178 : vector<1x8xi32>
    %180 = vector.broadcast %161 : vector<1x1xf32> to vector<1x8xf32>
    %181 = arith.mulf %152, %180 : vector<1x8xf32>
    %cst_52 = arith.constant 0.000000e+00 : f32
    %182 = vector.broadcast %cst_52 : f32 to vector<1x8xf32>
    %183 = arith.select %179, %181, %182 : vector<1x8xi1>, vector<1x8xf32>
    %184 = vector.broadcast %c2_i32 : i32 to vector<8x8xi32>
    %185 = arith.cmpi eq, %1, %184 : vector<8x8xi32>
    %186 = vector.broadcast %177 : vector<8x1xf32> to vector<8x8xf32>
    %187 = vector.broadcast %183 : vector<1x8xf32> to vector<8x8xf32>
    %188 = arith.mulf %186, %187 : vector<8x8xf32>
    %189 = arith.subf %140, %188 : vector<8x8xf32>
    %190 = vector.shape_cast %173 : vector<8x1xf32> to vector<8x1xf32>
    %191 = vector.broadcast %190 : vector<8x1xf32> to vector<8x8xf32>
    %192 = arith.select %185, %191, %189 : vector<8x8xi1>, vector<8x8xf32>
    %c0_53 = arith.constant 0 : index
    %c0_54 = arith.constant 0 : index
    %193 = vector.load %arg5[%c0_53, %c0_54] : memref<8x8xf32, #tpu.memory_space<vmem>>, vector<8x8xf32>
    tpu.vector_store %arg5[%c0_53, %c0_54], %192 {strides = array<i32>} : memref<8x8xf32, #tpu.memory_space<vmem>>, vector<8x8xf32>,
    %c3_i32 = arith.constant 3 : i32
    %c0_55 = arith.constant 0 : index
    %c0_56 = arith.constant 0 : index
    %194 = vector.load %arg5[%c0_55, %c0_56] : memref<8x8xf32, #tpu.memory_space<vmem>>, vector<8x8xf32>
    %195 = vector.broadcast %c3_i32 : i32 to vector<8x8xi32>
    %196 = arith.cmpi eq, %1, %195 : vector<8x8xi32>
    %cst_57 = arith.constant 0.000000e+00 : f32
    %197 = vector.broadcast %cst_57 : f32 to vector<8x8xf32>
    %198 = arith.select %196, %194, %197 : vector<8x8xi1>, vector<8x8xf32>
    %cst_58 = arith.constant dense<0.000000e+00> : vector<8xf32>
    %199 = vector.multi_reduction <add>, %198, %cst_58 [1] : vector<8x8xf32> to vector<8xf32>
    %200 = vector.shape_cast %199 : vector<8xf32> to vector<8x1xf32>
    %201 = vector.broadcast %c3_i32 : i32 to vector<8x8xi32>
    %202 = arith.cmpi eq, %0, %201 : vector<8x8xi32>
    %cst_59 = arith.constant 0.000000e+00 : f32
    %203 = vector.broadcast %cst_59 : f32 to vector<8x8xf32>
    %204 = arith.select %202, %194, %203 : vector<8x8xi1>, vector<8x8xf32>
    %cst_60 = arith.constant dense<0.000000e+00> : vector<8xf32>
    %205 = vector.multi_reduction <add>, %204, %cst_60 [0] : vector<8x8xf32> to vector<8xf32>
    %206 = vector.shape_cast %205 : vector<8xf32> to vector<1x8xf32>
    %207 = vector.broadcast %c3_i32 : i32 to vector<1x8xi32>
    %208 = arith.cmpi eq, %3, %207 : vector<1x8xi32>
    %cst_61 = arith.constant 0.000000e+00 : f32
    %209 = vector.broadcast %cst_61 : f32 to vector<1x8xf32>
    %210 = arith.select %208, %206, %209 : vector<1x8xi1>, vector<1x8xf32>
    %cst_62 = arith.constant dense<0.000000e+00> : vector<1xf32>
    %211 = vector.multi_reduction <add>, %210, %cst_62 [1] : vector<1x8xf32> to vector<1xf32>
    %212 = vector.shape_cast %211 : vector<1xf32> to vector<1x1xf32>
    %cst_63 = arith.constant 9.99999996E-13 : f32
    %213 = vector.broadcast %cst_63 : f32 to vector<1x1xf32>
    %214 = arith.maximumf %212, %213 : vector<1x1xf32>
    %215 = math.rsqrt %214 : vector<1x1xf32>
    %216 = arith.mulf %214, %215 : vector<1x1xf32>
    %217 = vector.broadcast %c3_i32 : i32 to vector<8x1xi32>
    %218 = arith.cmpi sgt, %2, %217 : vector<8x1xi32>
    %219 = vector.broadcast %215 : vector<1x1xf32> to vector<8x1xf32>
    %220 = arith.mulf %200, %219 : vector<8x1xf32>
    %221 = vector.broadcast %c3_i32 : i32 to vector<8x1xi32>
    %222 = arith.cmpi eq, %2, %221 : vector<8x1xi32>
    %cst_64 = arith.constant 0.000000e+00 : f32
    %223 = vector.shape_cast %216 : vector<1x1xf32> to vector<1x1xf32>
    %224 = vector.broadcast %223 : vector<1x1xf32> to vector<8x1xf32>
    %225 = vector.broadcast %cst_64 : f32 to vector<8x1xf32>
    %226 = arith.select %222, %224, %225 : vector<8x1xi1>, vector<8x1xf32>
    %227 = arith.select %218, %220, %226 : vector<8x1xi1>, vector<8x1xf32>
    %228 = vector.broadcast %c3_i32 : i32 to vector<8x1xi32>
    %229 = arith.cmpi sgt, %2, %228 : vector<8x1xi32>
    %cst_65 = arith.constant 0.000000e+00 : f32
    %230 = vector.broadcast %cst_65 : f32 to vector<8x1xf32>
    %231 = arith.select %229, %227, %230 : vector<8x1xi1>, vector<8x1xf32>
    %232 = vector.broadcast %c3_i32 : i32 to vector<1x8xi32>
    %233 = arith.cmpi sgt, %3, %232 : vector<1x8xi32>
    %234 = vector.broadcast %215 : vector<1x1xf32> to vector<1x8xf32>
    %235 = arith.mulf %206, %234 : vector<1x8xf32>
    %cst_66 = arith.constant 0.000000e+00 : f32
    %236 = vector.broadcast %cst_66 : f32 to vector<1x8xf32>
    %237 = arith.select %233, %235, %236 : vector<1x8xi1>, vector<1x8xf32>
    %238 = vector.broadcast %c3_i32 : i32 to vector<8x8xi32>
    %239 = arith.cmpi eq, %1, %238 : vector<8x8xi32>
    %240 = vector.broadcast %231 : vector<8x1xf32> to vector<8x8xf32>
    %241 = vector.broadcast %237 : vector<1x8xf32> to vector<8x8xf32>
    %242 = arith.mulf %240, %241 : vector<8x8xf32>
    %243 = arith.subf %194, %242 : vector<8x8xf32>
    %244 = vector.shape_cast %227 : vector<8x1xf32> to vector<8x1xf32>
    %245 = vector.broadcast %244 : vector<8x1xf32> to vector<8x8xf32>
    %246 = arith.select %239, %245, %243 : vector<8x8xi1>, vector<8x8xf32>
    %c0_67 = arith.constant 0 : index
    %c0_68 = arith.constant 0 : index
    %247 = vector.load %arg5[%c0_67, %c0_68] : memref<8x8xf32, #tpu.memory_space<vmem>>, vector<8x8xf32>
    tpu.vector_store %arg5[%c0_67, %c0_68], %246 {strides = array<i32>} : memref<8x8xf32, #tpu.memory_space<vmem>>, vector<8x8xf32>,
    %c4_i32 = arith.constant 4 : i32
    %c0_69 = arith.constant 0 : index
    %c0_70 = arith.constant 0 : index
    %248 = vector.load %arg5[%c0_69, %c0_70] : memref<8x8xf32, #tpu.memory_space<vmem>>, vector<8x8xf32>
    %249 = vector.broadcast %c4_i32 : i32 to vector<8x8xi32>
    %250 = arith.cmpi eq, %1, %249 : vector<8x8xi32>
    %cst_71 = arith.constant 0.000000e+00 : f32
    %251 = vector.broadcast %cst_71 : f32 to vector<8x8xf32>
    %252 = arith.select %250, %248, %251 : vector<8x8xi1>, vector<8x8xf32>
    %cst_72 = arith.constant dense<0.000000e+00> : vector<8xf32>
    %253 = vector.multi_reduction <add>, %252, %cst_72 [1] : vector<8x8xf32> to vector<8xf32>
    %254 = vector.shape_cast %253 : vector<8xf32> to vector<8x1xf32>
    %255 = vector.broadcast %c4_i32 : i32 to vector<8x8xi32>
    %256 = arith.cmpi eq, %0, %255 : vector<8x8xi32>
    %cst_73 = arith.constant 0.000000e+00 : f32
    %257 = vector.broadcast %cst_73 : f32 to vector<8x8xf32>
    %258 = arith.select %256, %248, %257 : vector<8x8xi1>, vector<8x8xf32>
    %cst_74 = arith.constant dense<0.000000e+00> : vector<8xf32>
    %259 = vector.multi_reduction <add>, %258, %cst_74 [0] : vector<8x8xf32> to vector<8xf32>
    %260 = vector.shape_cast %259 : vector<8xf32> to vector<1x8xf32>
    %261 = vector.broadcast %c4_i32 : i32 to vector<1x8xi32>
    %262 = arith.cmpi eq, %3, %261 : vector<1x8xi32>
    %cst_75 = arith.constant 0.000000e+00 : f32
    %263 = vector.broadcast %cst_75 : f32 to vector<1x8xf32>
    %264 = arith.select %262, %260, %263 : vector<1x8xi1>, vector<1x8xf32>
    %cst_76 = arith.constant dense<0.000000e+00> : vector<1xf32>
    %265 = vector.multi_reduction <add>, %264, %cst_76 [1] : vector<1x8xf32> to vector<1xf32>
    %266 = vector.shape_cast %265 : vector<1xf32> to vector<1x1xf32>
    %cst_77 = arith.constant 9.99999996E-13 : f32
    %267 = vector.broadcast %cst_77 : f32 to vector<1x1xf32>
    %268 = arith.maximumf %266, %267 : vector<1x1xf32>
    %269 = math.rsqrt %268 : vector<1x1xf32>
    %270 = arith.mulf %268, %269 : vector<1x1xf32>
    %271 = vector.broadcast %c4_i32 : i32 to vector<8x1xi32>
    %272 = arith.cmpi sgt, %2, %271 : vector<8x1xi32>
    %273 = vector.broadcast %269 : vector<1x1xf32> to vector<8x1xf32>
    %274 = arith.mulf %254, %273 : vector<8x1xf32>
    %275 = vector.broadcast %c4_i32 : i32 to vector<8x1xi32>
    %276 = arith.cmpi eq, %2, %275 : vector<8x1xi32>
    %cst_78 = arith.constant 0.000000e+00 : f32
    %277 = vector.shape_cast %270 : vector<1x1xf32> to vector<1x1xf32>
    %278 = vector.broadcast %277 : vector<1x1xf32> to vector<8x1xf32>
    %279 = vector.broadcast %cst_78 : f32 to vector<8x1xf32>
    %280 = arith.select %276, %278, %279 : vector<8x1xi1>, vector<8x1xf32>
    %281 = arith.select %272, %274, %280 : vector<8x1xi1>, vector<8x1xf32>
    %282 = vector.broadcast %c4_i32 : i32 to vector<8x1xi32>
    %283 = arith.cmpi sgt, %2, %282 : vector<8x1xi32>
    %cst_79 = arith.constant 0.000000e+00 : f32
    %284 = vector.broadcast %cst_79 : f32 to vector<8x1xf32>
    %285 = arith.select %283, %281, %284 : vector<8x1xi1>, vector<8x1xf32>
    %286 = vector.broadcast %c4_i32 : i32 to vector<1x8xi32>
    %287 = arith.cmpi sgt, %3, %286 : vector<1x8xi32>
    %288 = vector.broadcast %269 : vector<1x1xf32> to vector<1x8xf32>
    %289 = arith.mulf %260, %288 : vector<1x8xf32>
    %cst_80 = arith.constant 0.000000e+00 : f32
    %290 = vector.broadcast %cst_80 : f32 to vector<1x8xf32>
    %291 = arith.select %287, %289, %290 : vector<1x8xi1>, vector<1x8xf32>
    %292 = vector.broadcast %c4_i32 : i32 to vector<8x8xi32>
    %293 = arith.cmpi eq, %1, %292 : vector<8x8xi32>
    %294 = vector.broadcast %285 : vector<8x1xf32> to vector<8x8xf32>
    %295 = vector.broadcast %291 : vector<1x8xf32> to vector<8x8xf32>
    %296 = arith.mulf %294, %295 : vector<8x8xf32>
    %297 = arith.subf %248, %296 : vector<8x8xf32>
    %298 = vector.shape_cast %281 : vector<8x1xf32> to vector<8x1xf32>
    %299 = vector.broadcast %298 : vector<8x1xf32> to vector<8x8xf32>
    %300 = arith.select %293, %299, %297 : vector<8x8xi1>, vector<8x8xf32>
    %c0_81 = arith.constant 0 : index
    %c0_82 = arith.constant 0 : index
    %301 = vector.load %arg5[%c0_81, %c0_82] : memref<8x8xf32, #tpu.memory_space<vmem>>, vector<8x8xf32>
    tpu.vector_store %arg5[%c0_81, %c0_82], %300 {strides = array<i32>} : memref<8x8xf32, #tpu.memory_space<vmem>>, vector<8x8xf32>,
    %c5_i32 = arith.constant 5 : i32
    %c0_83 = arith.constant 0 : index
    %c0_84 = arith.constant 0 : index
    %302 = vector.load %arg5[%c0_83, %c0_84] : memref<8x8xf32, #tpu.memory_space<vmem>>, vector<8x8xf32>
    %303 = vector.broadcast %c5_i32 : i32 to vector<8x8xi32>
    %304 = arith.cmpi eq, %1, %303 : vector<8x8xi32>
    %cst_85 = arith.constant 0.000000e+00 : f32
    %305 = vector.broadcast %cst_85 : f32 to vector<8x8xf32>
    %306 = arith.select %304, %302, %305 : vector<8x8xi1>, vector<8x8xf32>
    %cst_86 = arith.constant dense<0.000000e+00> : vector<8xf32>
    %307 = vector.multi_reduction <add>, %306, %cst_86 [1] : vector<8x8xf32> to vector<8xf32>
    %308 = vector.shape_cast %307 : vector<8xf32> to vector<8x1xf32>
    %309 = vector.broadcast %c5_i32 : i32 to vector<8x8xi32>
    %310 = arith.cmpi eq, %0, %309 : vector<8x8xi32>
    %cst_87 = arith.constant 0.000000e+00 : f32
    %311 = vector.broadcast %cst_87 : f32 to vector<8x8xf32>
    %312 = arith.select %310, %302, %311 : vector<8x8xi1>, vector<8x8xf32>
    %cst_88 = arith.constant dense<0.000000e+00> : vector<8xf32>
    %313 = vector.multi_reduction <add>, %312, %cst_88 [0] : vector<8x8xf32> to vector<8xf32>
    %314 = vector.shape_cast %313 : vector<8xf32> to vector<1x8xf32>
    %315 = vector.broadcast %c5_i32 : i32 to vector<1x8xi32>
    %316 = arith.cmpi eq, %3, %315 : vector<1x8xi32>
    %cst_89 = arith.constant 0.000000e+00 : f32
    %317 = vector.broadcast %cst_89 : f32 to vector<1x8xf32>
    %318 = arith.select %316, %314, %317 : vector<1x8xi1>, vector<1x8xf32>
    %cst_90 = arith.constant dense<0.000000e+00> : vector<1xf32>
    %319 = vector.multi_reduction <add>, %318, %cst_90 [1] : vector<1x8xf32> to vector<1xf32>
    %320 = vector.shape_cast %319 : vector<1xf32> to vector<1x1xf32>
    %cst_91 = arith.constant 9.99999996E-13 : f32
    %321 = vector.broadcast %cst_91 : f32 to vector<1x1xf32>
    %322 = arith.maximumf %320, %321 : vector<1x1xf32>
    %323 = math.rsqrt %322 : vector<1x1xf32>
    %324 = arith.mulf %322, %323 : vector<1x1xf32>
    %325 = vector.broadcast %c5_i32 : i32 to vector<8x1xi32>
    %326 = arith.cmpi sgt, %2, %325 : vector<8x1xi32>
    %327 = vector.broadcast %323 : vector<1x1xf32> to vector<8x1xf32>
    %328 = arith.mulf %308, %327 : vector<8x1xf32>
    %329 = vector.broadcast %c5_i32 : i32 to vector<8x1xi32>
    %330 = arith.cmpi eq, %2, %329 : vector<8x1xi32>
    %cst_92 = arith.constant 0.000000e+00 : f32
    %331 = vector.shape_cast %324 : vector<1x1xf32> to vector<1x1xf32>
    %332 = vector.broadcast %331 : vector<1x1xf32> to vector<8x1xf32>
    %333 = vector.broadcast %cst_92 : f32 to vector<8x1xf32>
    %334 = arith.select %330, %332, %333 : vector<8x1xi1>, vector<8x1xf32>
    %335 = arith.select %326, %328, %334 : vector<8x1xi1>, vector<8x1xf32>
    %336 = vector.broadcast %c5_i32 : i32 to vector<8x1xi32>
    %337 = arith.cmpi sgt, %2, %336 : vector<8x1xi32>
    %cst_93 = arith.constant 0.000000e+00 : f32
    %338 = vector.broadcast %cst_93 : f32 to vector<8x1xf32>
    %339 = arith.select %337, %335, %338 : vector<8x1xi1>, vector<8x1xf32>
    %340 = vector.broadcast %c5_i32 : i32 to vector<1x8xi32>
    %341 = arith.cmpi sgt, %3, %340 : vector<1x8xi32>
    %342 = vector.broadcast %323 : vector<1x1xf32> to vector<1x8xf32>
    %343 = arith.mulf %314, %342 : vector<1x8xf32>
    %cst_94 = arith.constant 0.000000e+00 : f32
    %344 = vector.broadcast %cst_94 : f32 to vector<1x8xf32>
    %345 = arith.select %341, %343, %344 : vector<1x8xi1>, vector<1x8xf32>
    %346 = vector.broadcast %c5_i32 : i32 to vector<8x8xi32>
    %347 = arith.cmpi eq, %1, %346 : vector<8x8xi32>
    %348 = vector.broadcast %339 : vector<8x1xf32> to vector<8x8xf32>
    %349 = vector.broadcast %345 : vector<1x8xf32> to vector<8x8xf32>
    %350 = arith.mulf %348, %349 : vector<8x8xf32>
    %351 = arith.subf %302, %350 : vector<8x8xf32>
    %352 = vector.shape_cast %335 : vector<8x1xf32> to vector<8x1xf32>
    %353 = vector.broadcast %352 : vector<8x1xf32> to vector<8x8xf32>
    %354 = arith.select %347, %353, %351 : vector<8x8xi1>, vector<8x8xf32>
    %c0_95 = arith.constant 0 : index
    %c0_96 = arith.constant 0 : index
    %355 = vector.load %arg5[%c0_95, %c0_96] : memref<8x8xf32, #tpu.memory_space<vmem>>, vector<8x8xf32>
    tpu.vector_store %arg5[%c0_95, %c0_96], %354 {strides = array<i32>} : memref<8x8xf32, #tpu.memory_space<vmem>>, vector<8x8xf32>,
    %c6_i32 = arith.constant 6 : i32
    %c0_97 = arith.constant 0 : index
    %c0_98 = arith.constant 0 : index
    %356 = vector.load %arg5[%c0_97, %c0_98] : memref<8x8xf32, #tpu.memory_space<vmem>>, vector<8x8xf32>
    %357 = vector.broadcast %c6_i32 : i32 to vector<8x8xi32>
    %358 = arith.cmpi eq, %1, %357 : vector<8x8xi32>
    %cst_99 = arith.constant 0.000000e+00 : f32
    %359 = vector.broadcast %cst_99 : f32 to vector<8x8xf32>
    %360 = arith.select %358, %356, %359 : vector<8x8xi1>, vector<8x8xf32>
    %cst_100 = arith.constant dense<0.000000e+00> : vector<8xf32>
    %361 = vector.multi_reduction <add>, %360, %cst_100 [1] : vector<8x8xf32> to vector<8xf32>
    %362 = vector.shape_cast %361 : vector<8xf32> to vector<8x1xf32>
    %363 = vector.broadcast %c6_i32 : i32 to vector<8x8xi32>
    %364 = arith.cmpi eq, %0, %363 : vector<8x8xi32>
    %cst_101 = arith.constant 0.000000e+00 : f32
    %365 = vector.broadcast %cst_101 : f32 to vector<8x8xf32>
    %366 = arith.select %364, %356, %365 : vector<8x8xi1>, vector<8x8xf32>
    %cst_102 = arith.constant dense<0.000000e+00> : vector<8xf32>
    %367 = vector.multi_reduction <add>, %366, %cst_102 [0] : vector<8x8xf32> to vector<8xf32>
    %368 = vector.shape_cast %367 : vector<8xf32> to vector<1x8xf32>
    %369 = vector.broadcast %c6_i32 : i32 to vector<1x8xi32>
    %370 = arith.cmpi eq, %3, %369 : vector<1x8xi32>
    %cst_103 = arith.constant 0.000000e+00 : f32
    %371 = vector.broadcast %cst_103 : f32 to vector<1x8xf32>
    %372 = arith.select %370, %368, %371 : vector<1x8xi1>, vector<1x8xf32>
    %cst_104 = arith.constant dense<0.000000e+00> : vector<1xf32>
    %373 = vector.multi_reduction <add>, %372, %cst_104 [1] : vector<1x8xf32> to vector<1xf32>
    %374 = vector.shape_cast %373 : vector<1xf32> to vector<1x1xf32>
    %cst_105 = arith.constant 9.99999996E-13 : f32
    %375 = vector.broadcast %cst_105 : f32 to vector<1x1xf32>
    %376 = arith.maximumf %374, %375 : vector<1x1xf32>
    %377 = math.rsqrt %376 : vector<1x1xf32>
    %378 = arith.mulf %376, %377 : vector<1x1xf32>
    %379 = vector.broadcast %c6_i32 : i32 to vector<8x1xi32>
    %380 = arith.cmpi sgt, %2, %379 : vector<8x1xi32>
    %381 = vector.broadcast %377 : vector<1x1xf32> to vector<8x1xf32>
    %382 = arith.mulf %362, %381 : vector<8x1xf32>
    %383 = vector.broadcast %c6_i32 : i32 to vector<8x1xi32>
    %384 = arith.cmpi eq, %2, %383 : vector<8x1xi32>
    %cst_106 = arith.constant 0.000000e+00 : f32
    %385 = vector.shape_cast %378 : vector<1x1xf32> to vector<1x1xf32>
    %386 = vector.broadcast %385 : vector<1x1xf32> to vector<8x1xf32>
    %387 = vector.broadcast %cst_106 : f32 to vector<8x1xf32>
    %388 = arith.select %384, %386, %387 : vector<8x1xi1>, vector<8x1xf32>
    %389 = arith.select %380, %382, %388 : vector<8x1xi1>, vector<8x1xf32>
    %390 = vector.broadcast %c6_i32 : i32 to vector<8x1xi32>
    %391 = arith.cmpi sgt, %2, %390 : vector<8x1xi32>
    %cst_107 = arith.constant 0.000000e+00 : f32
    %392 = vector.broadcast %cst_107 : f32 to vector<8x1xf32>
    %393 = arith.select %391, %389, %392 : vector<8x1xi1>, vector<8x1xf32>
    %394 = vector.broadcast %c6_i32 : i32 to vector<1x8xi32>
    %395 = arith.cmpi sgt, %3, %394 : vector<1x8xi32>
    %396 = vector.broadcast %377 : vector<1x1xf32> to vector<1x8xf32>
    %397 = arith.mulf %368, %396 : vector<1x8xf32>
    %cst_108 = arith.constant 0.000000e+00 : f32
    %398 = vector.broadcast %cst_108 : f32 to vector<1x8xf32>
    %399 = arith.select %395, %397, %398 : vector<1x8xi1>, vector<1x8xf32>
    %400 = vector.broadcast %c6_i32 : i32 to vector<8x8xi32>
    %401 = arith.cmpi eq, %1, %400 : vector<8x8xi32>
    %402 = vector.broadcast %393 : vector<8x1xf32> to vector<8x8xf32>
    %403 = vector.broadcast %399 : vector<1x8xf32> to vector<8x8xf32>
    %404 = arith.mulf %402, %403 : vector<8x8xf32>
    %405 = arith.subf %356, %404 : vector<8x8xf32>
    %406 = vector.shape_cast %389 : vector<8x1xf32> to vector<8x1xf32>
    %407 = vector.broadcast %406 : vector<8x1xf32> to vector<8x8xf32>
    %408 = arith.select %401, %407, %405 : vector<8x8xi1>, vector<8x8xf32>
    %c0_109 = arith.constant 0 : index
    %c0_110 = arith.constant 0 : index
    %409 = vector.load %arg5[%c0_109, %c0_110] : memref<8x8xf32, #tpu.memory_space<vmem>>, vector<8x8xf32>
    tpu.vector_store %arg5[%c0_109, %c0_110], %408 {strides = array<i32>} : memref<8x8xf32, #tpu.memory_space<vmem>>, vector<8x8xf32>,
    %c7_i32 = arith.constant 7 : i32
    %c0_111 = arith.constant 0 : index
    %c0_112 = arith.constant 0 : index
    %410 = vector.load %arg5[%c0_111, %c0_112] : memref<8x8xf32, #tpu.memory_space<vmem>>, vector<8x8xf32>
    %411 = vector.broadcast %c7_i32 : i32 to vector<8x8xi32>
    %412 = arith.cmpi eq, %1, %411 : vector<8x8xi32>
    %cst_113 = arith.constant 0.000000e+00 : f32
    %413 = vector.broadcast %cst_113 : f32 to vector<8x8xf32>
    %414 = arith.select %412, %410, %413 : vector<8x8xi1>, vector<8x8xf32>
    %cst_114 = arith.constant dense<0.000000e+00> : vector<8xf32>
    %415 = vector.multi_reduction <add>, %414, %cst_114 [1] : vector<8x8xf32> to vector<8xf32>
    %416 = vector.shape_cast %415 : vector<8xf32> to vector<8x1xf32>
    %417 = vector.broadcast %c7_i32 : i32 to vector<8x8xi32>
    %418 = arith.cmpi eq, %0, %417 : vector<8x8xi32>
    %cst_115 = arith.constant 0.000000e+00 : f32
    %419 = vector.broadcast %cst_115 : f32 to vector<8x8xf32>
    %420 = arith.select %418, %410, %419 : vector<8x8xi1>, vector<8x8xf32>
    %cst_116 = arith.constant dense<0.000000e+00> : vector<8xf32>
    %421 = vector.multi_reduction <add>, %420, %cst_116 [0] : vector<8x8xf32> to vector<8xf32>
    %422 = vector.shape_cast %421 : vector<8xf32> to vector<1x8xf32>
    %423 = vector.broadcast %c7_i32 : i32 to vector<1x8xi32>
    %424 = arith.cmpi eq, %3, %423 : vector<1x8xi32>
    %cst_117 = arith.constant 0.000000e+00 : f32
    %425 = vector.broadcast %cst_117 : f32 to vector<1x8xf32>
    %426 = arith.select %424, %422, %425 : vector<1x8xi1>, vector<1x8xf32>
    %cst_118 = arith.constant dense<0.000000e+00> : vector<1xf32>
    %427 = vector.multi_reduction <add>, %426, %cst_118 [1] : vector<1x8xf32> to vector<1xf32>
    %428 = vector.shape_cast %427 : vector<1xf32> to vector<1x1xf32>
    %cst_119 = arith.constant 9.99999996E-13 : f32
    %429 = vector.broadcast %cst_119 : f32 to vector<1x1xf32>
    %430 = arith.maximumf %428, %429 : vector<1x1xf32>
    %431 = math.rsqrt %430 : vector<1x1xf32>
    %432 = arith.mulf %430, %431 : vector<1x1xf32>
    %433 = vector.broadcast %c7_i32 : i32 to vector<8x1xi32>
    %434 = arith.cmpi sgt, %2, %433 : vector<8x1xi32>
    %435 = vector.broadcast %431 : vector<1x1xf32> to vector<8x1xf32>
    %436 = arith.mulf %416, %435 : vector<8x1xf32>
    %437 = vector.broadcast %c7_i32 : i32 to vector<8x1xi32>
    %438 = arith.cmpi eq, %2, %437 : vector<8x1xi32>
    %cst_120 = arith.constant 0.000000e+00 : f32
    %439 = vector.shape_cast %432 : vector<1x1xf32> to vector<1x1xf32>
    %440 = vector.broadcast %439 : vector<1x1xf32> to vector<8x1xf32>
    %441 = vector.broadcast %cst_120 : f32 to vector<8x1xf32>
    %442 = arith.select %438, %440, %441 : vector<8x1xi1>, vector<8x1xf32>
    %443 = arith.select %434, %436, %442 : vector<8x1xi1>, vector<8x1xf32>
    %444 = vector.broadcast %c7_i32 : i32 to vector<8x1xi32>
    %445 = arith.cmpi sgt, %2, %444 : vector<8x1xi32>
    %cst_121 = arith.constant 0.000000e+00 : f32
    %446 = vector.broadcast %cst_121 : f32 to vector<8x1xf32>
    %447 = arith.select %445, %443, %446 : vector<8x1xi1>, vector<8x1xf32>
    %448 = vector.broadcast %c7_i32 : i32 to vector<1x8xi32>
    %449 = arith.cmpi sgt, %3, %448 : vector<1x8xi32>
    %450 = vector.broadcast %431 : vector<1x1xf32> to vector<1x8xf32>
    %451 = arith.mulf %422, %450 : vector<1x8xf32>
    %cst_122 = arith.constant 0.000000e+00 : f32
    %452 = vector.broadcast %cst_122 : f32 to vector<1x8xf32>
    %453 = arith.select %449, %451, %452 : vector<1x8xi1>, vector<1x8xf32>
    %454 = vector.broadcast %c7_i32 : i32 to vector<8x8xi32>
    %455 = arith.cmpi eq, %1, %454 : vector<8x8xi32>
    %456 = vector.broadcast %447 : vector<8x1xf32> to vector<8x8xf32>
    %457 = vector.broadcast %453 : vector<1x8xf32> to vector<8x8xf32>
    %458 = arith.mulf %456, %457 : vector<8x8xf32>
    %459 = arith.subf %410, %458 : vector<8x8xf32>
    %460 = vector.shape_cast %443 : vector<8x1xf32> to vector<8x1xf32>
    %461 = vector.broadcast %460 : vector<8x1xf32> to vector<8x8xf32>
    %462 = arith.select %455, %461, %459 : vector<8x8xi1>, vector<8x8xf32>
    %c0_123 = arith.constant 0 : index
    %c0_124 = arith.constant 0 : index
    %463 = vector.load %arg5[%c0_123, %c0_124] : memref<8x8xf32, #tpu.memory_space<vmem>>, vector<8x8xf32>
    tpu.vector_store %arg5[%c0_123, %c0_124], %462 {strides = array<i32>} : memref<8x8xf32, #tpu.memory_space<vmem>>, vector<8x8xf32>,
    %c8_i32 = arith.constant 8 : i32
    %c0_125 = arith.constant 0 : index
    %c0_126 = arith.constant 0 : index
    %464 = vector.load %arg5[%c0_125, %c0_126] : memref<8x8xf32, #tpu.memory_space<vmem>>, vector<8x8xf32>
    %c0_127 = arith.constant 0 : index
    %c0_128 = arith.constant 0 : index
    %c0_129 = arith.constant 0 : index
    %465 = vector.load %arg2[%c0_127, %c0_128, %c0_129] : memref<1x8x128xf32, #tpu.memory_space<vmem>>, vector<1x8x128xf32>
    %466 = vector.shape_cast %465 : vector<1x8x128xf32> to vector<8x128xf32>
    %cst_130 = arith.constant dense<0.000000e+00> : vector<8x128xf32>
    %467 = tpu.matmul %464, %466, %cst_130 {dimension_numbers = #tpu.dot_dimension_numbers<[1], [0], [0], [1], [0, 0, 1, 1], [], []>} : vector<8x8xf32>, vector<8x128xf32>, vector<8x128xf32> -> vector<8x128xf32>
    %c0_131 = arith.constant 0 : index
    %c0_132 = arith.constant 0 : index
    %c0_133 = arith.constant 0 : index
    %468 = vector.load %arg3[%c0_131, %c0_132, %c0_133] : memref<1x8x128xf32, #tpu.memory_space<vmem>>, vector<1x8x128xf32>
    %469 = vector.shape_cast %468 : vector<1x8x128xf32> to vector<8x128xf32>
    %470 = vector.shape_cast %467 : vector<8x128xf32> to vector<1x8x128xf32>
    tpu.vector_store %arg3[%c0_131, %c0_132, %c0_133], %470 {strides = array<i32>} : memref<1x8x128xf32, #tpu.memory_space<vmem>>, vector<1x8x128xf32>,
    return
  }
  func.func @transform_0(%arg0: i32) -> (i32, i32, i32) {
    %c0_i32 = arith.constant 0 : i32
    %c0_i32_0 = arith.constant 0 : i32
    %c0_i32_1 = arith.constant 0 : i32
    return %arg0, %c0_i32, %c0_i32_0 : i32, i32, i32
  }
  func.func @transform_1(%arg0: i32) -> (i32, i32, i32) {
    %c0_i32 = arith.constant 0 : i32
    %c0_i32_0 = arith.constant 0 : i32
    %c0_i32_1 = arith.constant 0 : i32
    return %arg0, %c0_i32, %c0_i32_0 : i32, i32, i32
  }
  func.func @transform_2(%arg0: i32) -> (i32, i32, i32) {
    %c0_i32 = arith.constant 0 : i32
    %c0_i32_0 = arith.constant 0 : i32
    %c0_i32_1 = arith.constant 0 : i32
    return %arg0, %c0_i32, %c0_i32_0 : i32, i32, i32
  }
  func.func @transform_3(%arg0: i32) -> (i32, i32, i32) {
    %c0_i32 = arith.constant 0 : i32
    %c0_i32_0 = arith.constant 0 : i32
    %c0_i32_1 = arith.constant 0 : i32
    return %arg0, %c0_i32, %c0_i32_0 : i32, i32, i32
  }
}

</mosaic_0001>

<llo_original>
// kernel: tpu_custom_call.1
$region0: #{tpu_custom_call.1}
  #allocation0 [shape = 'u32[]', space=smem, size = 0x4, offset = 0x4, fixed_abs, tag = 'smem constant byte address 0x4 - core index']
  #allocation1 [shape = 'u32[144,128]{1,0:T(1,128)}', space=vmem, size = 0x12000, scoped, tag = 'internal scratch']
  #allocation2 [shape = 'f32[8,8]{1,0:T(8,128)}', space=vmem, size = 0x1000, scoped, tag = 'scratch operand']
  %s0 = inlined_call_operand.hbm [shape: f32[4,1,8], index: 0, kind: input, shape index: {}]
  %s1 = inlined_call_operand.hbm [shape: f32[4,8,128], index: 1, kind: input, shape index: {}]
  %s2 = inlined_call_operand.hbm [shape: f32[4,8,128], index: 2, kind: output, shape index: {0}]
  %s3 = inlined_call_operand.hbm [shape: f32[4,8,8], index: 3, kind: output, shape index: {1}]
  %4 = xla_tuple %s2, %s3
  %s5 = sld [smem:[#allocation0]]
  $region57: #{tpu_custom_call.1} parent=0
    _
  %s7 = ssub.s32 1, %s5
  %s8 = scalar_select 0, %s7, %s5
  $region1: #{tpu_custom_call.1} parent=0
    #allocation3 [shape = 'u8[1024]{0}', space=vmem, size = 0x400, scoped, tag = 'input window, operand 0']
    #allocation4 [shape = 's32[2]{0}', space=sflag, size = 0x8, scoped, tag = 'scoped memory for tpu_custom_call.1']
    #allocation5 [shape = 's32[2]{0}', space=sflag, size = 0x8, scoped, tag = 'scoped memory for tpu_custom_call.1']
    #allocation6 [shape = 'u8[8192]{0}', space=vmem, size = 0x2000, scoped, tag = 'input window, operand 1']
    #allocation7 [shape = 's32[2]{0}', space=sflag, size = 0x8, scoped, tag = 'scoped memory for tpu_custom_call.1']
    #allocation8 [shape = 'u8[8192]{0}', space=vmem, size = 0x2000, scoped, tag = 'output window, operand 0']
    #allocation9 [shape = 'u8[8192]{0}', space=vmem, size = 0x2000, scoped, tag = 'output window, operand 1']
    #allocation10 [shape = 's32[2]{0}', space=sflag, size = 0x8, scoped, tag = 'scoped memory for tpu_custom_call.1']
    %9 = vsyncpa [#allocation4], 0
    %s10 = scalar_lea.sflag [#allocation4], 1
    %11 = vsyncpa %s10, 0
    %12 = vsyncpa [#allocation7], 0
    %s13 = scalar_lea.sflag [#allocation7], 1
    %14 = vsyncpa %s13, 0
    %15 = vsyncpa [#allocation5], 0
    %s16 = scalar_lea.sflag [#allocation5], 1
    %17 = vsyncpa %s16, 0
    %18 = vsyncpa [#allocation10], 0
    %s19 = scalar_lea.sflag [#allocation10], 1
    %20 = vsyncpa %s19, 0
    loop: start=0, step=1, limit=6
    $region2: #{tpu_custom_call.1} parent=1 // loop_pre_header
      _
    $region3: #{tpu_custom_call.1} parent=1 // loop_header
      %s22 = sphi 0, %s26
      %p23 = scmp.ge.s32.totalorder %s22, 6
      %s32 = sphi 0, %s34
      %s35 = sphi 0, %s32
      %s36 = sphi 0, %s35
      %s52 = sphi 0, %s36
      %s58 = sphi 0, %s60
      %s61 = sphi 0, %s58
      %s62 = sphi 0, %s61
      %s78 = sphi 0, %s62
      %s84 = sphi 0, %s86
      %s87 = sphi 0, %s84
      %s88 = sphi 0, %s87
      %s104 = sphi 0, %s88
      %s110 = sphi 0, %s112
      %s113 = sphi 0, %s110
      %s114 = sphi 0, %s113
      %s130 = sphi 0, %s114
    $region4: #{tpu_custom_call.1} parent=1 // loop_header_branch
      %25 = sbr.rel (%p23) target = $region8
    $region5: #{tpu_custom_call.1} parent=1 // loop_body
      %s27 = ssub.s32 %s22, 1
      %s28 = ssub.s32 %s22, 2
      %s29 = sadd.s32 %s22, 1
      %s30 = ssub.s32 %s22, %s29
      %p31 = scmp.eq.s32.totalorder %s30, 0
      %s33 = sadd.s32 %s32, 1
      %s34 = scalar_select %p31, %s32, %s33
      %p37 = pneg %p31
      %p38 = scmp.eq.s32.totalorder %s22, 3
      %p39 = por %p37, %p38
      %p40 = scmp.ne.s32.totalorder %s32, %s35
      %p41 = scmp.eq.s32.totalorder %s22, 0
      %p42 = por %p40, %p41
      %p43 = scmp.ne.s32.totalorder %s32, %s35
      %p44 = scmp.eq.s32.totalorder %s27, 3
      %p45 = por %p43, %p44
      %p46 = scmp.ne.s32.totalorder %s35, %s36
      %p47 = scmp.eq.s32.totalorder %s27, 0
      %p48 = por %p46, %p47
      %p49 = scmp.ne.s32.totalorder %s35, %s36
      %p50 = scmp.eq.s32.totalorder %s28, 3
      %p51 = por %p49, %p50
      %p53 = scmp.ne.s32.totalorder %s36, %s52
      %p54 = scmp.eq.s32.totalorder %s28, 0
      %p55 = por %p53, %p54
      %s56 = ssub.s32 %s22, %s29
      %p57 = scmp.eq.s32.totalorder %s56, 0
      %s59 = sadd.s32 %s58, 1
      %s60 = scalar_select %p57, %s58, %s59
      %p63 = pneg %p57
      %p64 = scmp.eq.s32.totalorder %s22, 3
      %p65 = por %p63, %p64
      %p66 = scmp.ne.s32.totalorder %s58, %s61
      %p67 = scmp.eq.s32.totalorder %s22, 0
      %p68 = por %p66, %p67
      %p69 = scmp.ne.s32.totalorder %s58, %s61
      %p70 = scmp.eq.s32.totalorder %s27, 3
      %p71 = por %p69, %p70
      %p72 = scmp.ne.s32.totalorder %s61, %s62
      %p73 = scmp.eq.s32.totalorder %s27, 0
      %p74 = por %p72, %p73
      %p75 = scmp.ne.s32.totalorder %s61, %s62
      %p76 = scmp.eq.s32.totalorder %s28, 3
      %p77 = por %p75, %p76
      %p79 = scmp.ne.s32.totalorder %s62, %s78
      %p80 = scmp.eq.s32.totalorder %s28, 0
      %p81 = por %p79, %p80
      %s82 = ssub.s32 %s22, %s29
      %p83 = scmp.eq.s32.totalorder %s82, 0
      %s85 = sadd.s32 %s84, 1
      %s86 = scalar_select %p83, %s84, %s85
      %p89 = pneg %p83
      %p90 = scmp.eq.s32.totalorder %s22, 3
      %p91 = por %p89, %p90
      %p92 = scmp.ne.s32.totalorder %s84, %s87
      %p93 = scmp.eq.s32.totalorder %s22, 0
      %p94 = por %p92, %p93
      %p95 = scmp.ne.s32.totalorder %s84, %s87
      %p96 = scmp.eq.s32.totalorder %s27, 3
      %p97 = por %p95, %p96
      %p98 = scmp.ne.s32.totalorder %s87, %s88
      %p99 = scmp.eq.s32.totalorder %s27, 0
      %p100 = por %p98, %p99
      %p101 = scmp.ne.s32.totalorder %s87, %s88
      %p102 = scmp.eq.s32.totalorder %s28, 3
      %p103 = por %p101, %p102
      %p105 = scmp.ne.s32.totalorder %s88, %s104
      %p106 = scmp.eq.s32.totalorder %s28, 0
      %p107 = por %p105, %p106
      %s108 = ssub.s32 %s22, %s29
      %p109 = scmp.eq.s32.totalorder %s108, 0
      %s111 = sadd.s32 %s110, 1
      %s112 = scalar_select %p109, %s110, %s111
      %p115 = pneg %p109
      %p116 = scmp.eq.s32.totalorder %s22, 3
      %p117 = por %p115, %p116
      %p118 = scmp.ne.s32.totalorder %s110, %s113
      %p119 = scmp.eq.s32.totalorder %s22, 0
      %p120 = por %p118, %p119
      %p121 = scmp.ne.s32.totalorder %s110, %s113
      %p122 = scmp.eq.s32.totalorder %s27, 3
      %p123 = por %p121, %p122
      %p124 = scmp.ne.s32.totalorder %s113, %s114
      %p125 = scmp.eq.s32.totalorder %s27, 0
      %p126 = por %p124, %p125
      %p127 = scmp.ne.s32.totalorder %s113, %s114
      %p128 = scmp.eq.s32.totalorder %s28, 3
      %p129 = por %p127, %p128
      %p131 = scmp.ne.s32.totalorder %s114, %s130
      %p132 = scmp.eq.s32.totalorder %s28, 0
      %p133 = por %p131, %p132
      %p134 = scmp.le.s32.totalorder 1, %s22
      %p135 = scmp.lt.s32.totalorder %s22, 5
      %p136 = pnand %p134, %p135
      %p137 = pneg %p136
      // Predicated region
      $region9: #{tpu_custom_call.1} parent=5 // pred_check
        _
      $region10: #{tpu_custom_call.1} parent=5 // pred_check_branch
        %139 = sbr.rel (%p136) target = $region12
      $region11: #{tpu_custom_call.1} parent=5 // pred_region
        %s140 = ssub.s32 %s22, 1
      $region12: #{tpu_custom_call.1} parent=5 // pred_fallthru
        _
      %p141 = scmp.lt.s32.totalorder %s22, 4
      // Predicated region
      $region13: #{tpu_custom_call.1} parent=5 // pred_check
        %p142 = pneg %p141
      $region14: #{tpu_custom_call.1} parent=5 // pred_check_branch
        %144 = sbr.rel (%p142) target = $region16
      $region15: #{tpu_custom_call.1} parent=5 // pred_region
        // Predicated region
        $region17: #{tpu_custom_call.1} parent=15 // pred_check
          %p145 = pneg %p42
        $region18: #{tpu_custom_call.1} parent=15 // pred_check_branch
          %147 = sbr.rel (%p145) target = $region20
        $region19: #{tpu_custom_call.1} parent=15 // pred_region
          %s148 = sand.u32 %s32, 1
          %s149 = scalar_lea.sflag [#allocation4], %s148
          %s150 = sand.u32 %s32, 1
          %s151 = scalar_lea.vmem [#allocation3], %s150
          %s153 = ssub.s32 16, 16
          %154 = vsyncadd %s149, %s153
          %s155 = smul.addr %s22, 16
          %s156 = scalar_lea.hbm %s0, %s155
          %s158 = sshll.u32 %s151, 4
          %s159 = int_to_ptr.vmem [resolvable:$true] %s158
          %161 = dma.hbm_to_vmem [thread:$0]  %s156, 16, %s159, %s149
        $region20: #{tpu_custom_call.1} parent=15 // pred_fallthru
          _
        // Predicated region
        $region21: #{tpu_custom_call.1} parent=15 // pred_check
          %p162 = pneg %p68
        $region22: #{tpu_custom_call.1} parent=15 // pred_check_branch
          %164 = sbr.rel (%p162) target = $region24
        $region23: #{tpu_custom_call.1} parent=15 // pred_region
          %s165 = sand.u32 %s58, 1
          %s166 = scalar_lea.sflag [#allocation7], %s165
          %s167 = sand.u32 %s58, 1
          %s168 = smul.addr %s167, 8
          %s169 = scalar_lea.vmem [#allocation6], %s168
          %s171 = ssub.s32 128, 128
          %172 = vsyncadd %s166, %s171
          %s173 = smul.addr %s22, 128
          %s174 = scalar_lea.hbm %s1, %s173
          %s176 = sshll.u32 %s169, 4
          %s177 = int_to_ptr.vmem [resolvable:$true] %s176
          %179 = dma.hbm_to_vmem [thread:$0]  %s174, 128, %s177, %s166
        $region24: #{tpu_custom_call.1} parent=15 // pred_fallthru
          _
      $region16: #{tpu_custom_call.1} parent=5 // pred_fallthru
        _
      %p180 = scmp.le.s32.totalorder 1, %s22
      %p181 = scmp.lt.s32.totalorder %s22, 5
      %p182 = pnand %p180, %p181
      %p183 = pneg %p182
      // Predicated region
      $region25: #{tpu_custom_call.1} parent=5 // pred_check
        _
      $region26: #{tpu_custom_call.1} parent=5 // pred_check_branch
        %185 = sbr.rel (%p182) target = $region28
      $region27: #{tpu_custom_call.1} parent=5 // pred_region
        %s186 = ssub.s32 %s22, 1
        %s187 = sand.u32 %s35, 1
        %s188 = scalar_lea.sflag [#allocation4], %s187
        %s189 = sand.u32 %s35, 1
        %s190 = scalar_lea.vmem [#allocation3], %s189
        // Predicated region
        $region29: #{tpu_custom_call.1} parent=27 // pred_check
          %p191 = pneg %p48
        $region30: #{tpu_custom_call.1} parent=27 // pred_check_branch
          %193 = sbr.rel (%p191) target = $region32
        $region31: #{tpu_custom_call.1} parent=27 // pred_region
          %194 = dma.done %s188, 16
        $region32: #{tpu_custom_call.1} parent=27 // pred_fallthru
          _
        %s195 = sand.u32 %s61, 1
        %s196 = scalar_lea.sflag [#allocation7], %s195
        %s197 = sand.u32 %s61, 1
        %s198 = smul.addr %s197, 8
        %s199 = scalar_lea.vmem [#allocation6], %s198
        // Predicated region
        $region33: #{tpu_custom_call.1} parent=27 // pred_check
          %p200 = pneg %p74
        $region34: #{tpu_custom_call.1} parent=27 // pred_check_branch
          %202 = sbr.rel (%p200) target = $region36
        $region35: #{tpu_custom_call.1} parent=27 // pred_region
          %203 = dma.done %s196, 128
        $region36: #{tpu_custom_call.1} parent=27 // pred_fallthru
          _
        %s204 = sand.u32 %s35, 1
        %s205 = scalar_lea.sflag [#allocation4], %s204
        %s206 = sand.u32 %s35, 1
        %s207 = scalar_lea.vmem [#allocation3], %s206
        %p208 = pneg %p48
        %p209 = pneg %p45
        %s210 = sand.u32 %s61, 1
        %s211 = scalar_lea.sflag [#allocation7], %s210
        %s212 = sand.u32 %s61, 1
        %s213 = smul.addr %s212, 8
        %s214 = scalar_lea.vmem [#allocation6], %s213
        %p215 = pneg %p74
        %p216 = pneg %p71
        %p217 = pneg %p100
        %p218 = pneg %p97
        %s219 = sand.u32 %s87, 1
        %s220 = scalar_lea.sflag [#allocation5], %s219
        %s221 = sand.u32 %s87, 1
        %s222 = smul.addr %s221, 8
        %s223 = scalar_lea.vmem [#allocation8], %s222
        %p224 = pneg %p126
        %p225 = pneg %p123
        %s226 = sand.u32 %s113, 1
        %s227 = scalar_lea.sflag [#allocation10], %s226
        %s228 = sand.u32 %s113, 1
        %s229 = smul.addr %s228, 8
        %s230 = scalar_lea.vmem [#allocation9], %s229
        %v231 = vlaneseq
        %v232 = vshrl.u32 %v231, 7
        %v233 = vlaneseq
        %v234 = vand.u32 %v233, 127
        %v235 = vld [vmem:[%s190] sm:$0x1]
        %vm236 = vcmp.eq.s32.totalorder %v232, %v234
        %v238 = vlaneseq
        %v239 = vshrl.u32 %v238, 7
        %v240 = vsub.s32 0, %v239
        %v241 = vrot.slane %v235, %v240
        %v243 = vsel %vm236, %v241, 0.0
        %vm244 = vcmask 64512
        %v245 = vsel %vm244, %v243, 0.0
        %246 = vadd.xlane.f32.xlu0 %v245
        %v247 = vpop.xlane.xlu0 %246
        %v248 = vsub.f32 %v247, %v241
        %v249 = vmul.f32 %v248, %v248
        %v250 = vrcp.pop 2.25
        %v251 = vmul.f32 %v249, %v250
        %v252 = vadd.f32 %v251, 1.0
        %v253 = vrcp.pop %v252
        %v254 = vmul.f32 1.05, %v253
        %v255 = vsel %vm236, 1e-06, 0.0
        %v256 = vadd.f32 %v254, %v255
        %257 = vst.msk [vmem:[%s230] sm:$0xff] %vm244, %v256
        %258 = vst.msk [vmem:[#allocation2] sm:$0xff] %vm244, %v256
        %v259 = vld [vmem:[#allocation2] sm:$0xff]
        %vm260 = vcmp.eq.s32.totalorder %v234, 0
        %v261 = vsel %vm260, %v259, 0.0
        %v262 = vsel %vm244, %v261, 0.0
        %263 = vadd.xlane.f32.xlu0 %v262
        %v264 = vpop.xlane.xlu0 %263
        %vm265 = vcmp.eq.s32.totalorder %v232, 0
        %v266 = vsel %vm265, %v259, 0.0
        %v267 = vsel %vm244, %v266, 0.0
        %v268 = vrot.slane %v267, 4
        %v269 = vadd.f32 %v267, %v268
        %v270 = vrot.slane %v269, 2
        %v271 = vadd.f32 %v269, %v270
        %v272 = vrot.slane %v271, 1
        %v273 = vadd.f32 %v271, %v272
        %v274 = vsel %vm260, %v273, 0.0
        %v275 = vsel %vm244, %v274, 0.0
        %276 = vadd.xlane.f32.xlu0 %v275
        %v277 = vpop.xlane.xlu0 %276
        %v278 = vmax.f32 %v277, 1e-12
        %v279 = vrsqrt.pop %v278
        %v280 = vmul.f32 %v278, %v279
        %vm281 = vcmp.gt.s32.totalorder %v232, 0
        %v282 = vmul.f32 %v264, %v279
        %v283 = vsel %vm265, %v280, 0.0
        %v284 = vsel %vm281, %v282, %v283
        %v285 = vsel %vm281, %v282, 0.0
        %vm286 = vcmp.gt.s32.totalorder %v234, 0
        %v287 = vmul.f32 %v273, %v279
        %v288 = vsel %vm286, %v287, 0.0
        %v289 = vmul.f32 %v285, %v288
        %v290 = vsub.f32 %v259, %v289
        %v291 = vsel %vm260, %v284, %v290
        %292 = vst.msk [vmem:[#allocation2] sm:$0xff] %vm244, %v291
        %v293 = vld [vmem:[#allocation2] sm:$0xff]
        %vm294 = vcmp.eq.s32.totalorder %v234, 1
        %v295 = vsel %vm294, %v293, 0.0
        %v296 = vsel %vm244, %v295, 0.0
        %297 = vadd.xlane.f32.xlu0 %v296
        %v298 = vpop.xlane.xlu0 %297
        %vm299 = vcmp.eq.s32.totalorder %v232, 1
        %v300 = vsel %vm299, %v293, 0.0
        %v301 = vsel %vm244, %v300, 0.0
        %v302 = vrot.slane %v301, 4
        %v303 = vadd.f32 %v301, %v302
        %v304 = vrot.slane %v303, 2
        %v305 = vadd.f32 %v303, %v304
        %v306 = vrot.slane %v305, 1
        %v307 = vadd.f32 %v305, %v306
        %v308 = vsel %vm294, %v307, 0.0
        %v309 = vsel %vm244, %v308, 0.0
        %310 = vadd.xlane.f32.xlu0 %v309
        %v311 = vpop.xlane.xlu0 %310
        %v312 = vmax.f32 %v311, 1e-12
        %v313 = vrsqrt.pop %v312
        %v314 = vmul.f32 %v312, %v313
        %vm315 = vcmp.gt.s32.totalorder %v232, 1
        %v316 = vmul.f32 %v298, %v313
        %v317 = vsel %vm299, %v314, 0.0
        %v318 = vsel %vm315, %v316, %v317
        %v319 = vsel %vm315, %v316, 0.0
        %vm320 = vcmp.gt.s32.totalorder %v234, 1
        %v321 = vmul.f32 %v307, %v313
        %v322 = vsel %vm320, %v321, 0.0
        %v323 = vmul.f32 %v319, %v322
        %v324 = vsub.f32 %v293, %v323
        %v325 = vsel %vm294, %v318, %v324
        %326 = vst.msk [vmem:[#allocation2] sm:$0xff] %vm244, %v325
        %v327 = vld [vmem:[#allocation2] sm:$0xff]
        %vm328 = vcmp.eq.s32.totalorder %v234, 2
        %v329 = vsel %vm328, %v327, 0.0
        %v330 = vsel %vm244, %v329, 0.0
        %331 = vadd.xlane.f32.xlu0 %v330
        %v332 = vpop.xlane.xlu0 %331
        %vm333 = vcmp.eq.s32.totalorder %v232, 2
        %v334 = vsel %vm333, %v327, 0.0
        %v335 = vsel %vm244, %v334, 0.0
        %v336 = vrot.slane %v335, 4
        %v337 = vadd.f32 %v335, %v336
        %v338 = vrot.slane %v337, 2
        %v339 = vadd.f32 %v337, %v338
        %v340 = vrot.slane %v339, 1
        %v341 = vadd.f32 %v339, %v340
        %v342 = vsel %vm328, %v341, 0.0
        %v343 = vsel %vm244, %v342, 0.0
        %344 = vadd.xlane.f32.xlu0 %v343
        %v345 = vpop.xlane.xlu0 %344
        %v346 = vmax.f32 %v345, 1e-12
        %v347 = vrsqrt.pop %v346
        %v348 = vmul.f32 %v346, %v347
        %vm349 = vcmp.gt.s32.totalorder %v232, 2
        %v350 = vmul.f32 %v332, %v347
        %v351 = vsel %vm333, %v348, 0.0
        %v352 = vsel %vm349, %v350, %v351
        %v353 = vsel %vm349, %v350, 0.0
        %vm354 = vcmp.gt.s32.totalorder %v234, 2
        %v355 = vmul.f32 %v341, %v347
        %v356 = vsel %vm354, %v355, 0.0
        %v357 = vmul.f32 %v353, %v356
        %v358 = vsub.f32 %v327, %v357
        %v359 = vsel %vm328, %v352, %v358
        %360 = vst.msk [vmem:[#allocation2] sm:$0xff] %vm244, %v359
        %v361 = vld [vmem:[#allocation2] sm:$0xff]
        %vm362 = vcmp.eq.s32.totalorder %v234, 3
        %v363 = vsel %vm362, %v361, 0.0
        %v364 = vsel %vm244, %v363, 0.0
        %365 = vadd.xlane.f32.xlu0 %v364
        %v366 = vpop.xlane.xlu0 %365
        %vm367 = vcmp.eq.s32.totalorder %v232, 3
        %v368 = vsel %vm367, %v361, 0.0
        %v369 = vsel %vm244, %v368, 0.0
        %v370 = vrot.slane %v369, 4
        %v371 = vadd.f32 %v369, %v370
        %v372 = vrot.slane %v371, 2
        %v373 = vadd.f32 %v371, %v372
        %v374 = vrot.slane %v373, 1
        %v375 = vadd.f32 %v373, %v374
        %v376 = vsel %vm362, %v375, 0.0
        %v377 = vsel %vm244, %v376, 0.0
        %378 = vadd.xlane.f32.xlu0 %v377
        %v379 = vpop.xlane.xlu0 %378
        %v380 = vmax.f32 %v379, 1e-12
        %v381 = vrsqrt.pop %v380
        %v382 = vmul.f32 %v380, %v381
        %vm383 = vcmp.gt.s32.totalorder %v232, 3
        %v384 = vmul.f32 %v366, %v381
        %v385 = vsel %vm367, %v382, 0.0
        %v386 = vsel %vm383, %v384, %v385
        %v387 = vsel %vm383, %v384, 0.0
        %vm388 = vcmp.gt.s32.totalorder %v234, 3
        %v389 = vmul.f32 %v375, %v381
        %v390 = vsel %vm388, %v389, 0.0
        %v391 = vmul.f32 %v387, %v390
        %v392 = vsub.f32 %v361, %v391
        %v393 = vsel %vm362, %v386, %v392
        %394 = vst.msk [vmem:[#allocation2] sm:$0xff] %vm244, %v393
        %v395 = vld [vmem:[#allocation2] sm:$0xff]
        %vm396 = vcmp.eq.s32.totalorder %v234, 4
        %v397 = vsel %vm396, %v395, 0.0
        %v398 = vsel %vm244, %v397, 0.0
        %399 = vadd.xlane.f32.xlu0 %v398
        %v400 = vpop.xlane.xlu0 %399
        %vm401 = vcmp.eq.s32.totalorder %v232, 4
        %v402 = vsel %vm401, %v395, 0.0
        %v403 = vsel %vm244, %v402, 0.0
        %v404 = vrot.slane %v403, 4
        %v405 = vadd.f32 %v403, %v404
        %v406 = vrot.slane %v405, 2
        %v407 = vadd.f32 %v405, %v406
        %v408 = vrot.slane %v407, 1
        %v409 = vadd.f32 %v407, %v408
        %v410 = vsel %vm396, %v409, 0.0
        %v411 = vsel %vm244, %v410, 0.0
        %412 = vadd.xlane.f32.xlu0 %v411
        %v413 = vpop.xlane.xlu0 %412
        %v414 = vmax.f32 %v413, 1e-12
        %v415 = vrsqrt.pop %v414
        %v416 = vmul.f32 %v414, %v415
        %vm417 = vcmp.gt.s32.totalorder %v232, 4
        %v418 = vmul.f32 %v400, %v415
        %v419 = vsel %vm401, %v416, 0.0
        %v420 = vsel %vm417, %v418, %v419
        %v421 = vsel %vm417, %v418, 0.0
        %vm422 = vcmp.gt.s32.totalorder %v234, 4
        %v423 = vmul.f32 %v409, %v415
        %v424 = vsel %vm422, %v423, 0.0
        %v425 = vmul.f32 %v421, %v424
        %v426 = vsub.f32 %v395, %v425
        %v427 = vsel %vm396, %v420, %v426
        %428 = vst.msk [vmem:[#allocation2] sm:$0xff] %vm244, %v427
        %v429 = vld [vmem:[#allocation2] sm:$0xff]
        %vm430 = vcmp.eq.s32.totalorder %v234, 5
        %v431 = vsel %vm430, %v429, 0.0
        %v432 = vsel %vm244, %v431, 0.0
        %433 = vadd.xlane.f32.xlu0 %v432
        %v434 = vpop.xlane.xlu0 %433
        %vm435 = vcmp.eq.s32.totalorder %v232, 5
        %v436 = vsel %vm435, %v429, 0.0
        %v437 = vsel %vm244, %v436, 0.0
        %v438 = vrot.slane %v437, 4
        %v439 = vadd.f32 %v437, %v438
        %v440 = vrot.slane %v439, 2
        %v441 = vadd.f32 %v439, %v440
        %v442 = vrot.slane %v441, 1
        %v443 = vadd.f32 %v441, %v442
        %v444 = vsel %vm430, %v443, 0.0
        %v445 = vsel %vm244, %v444, 0.0
        %446 = vadd.xlane.f32.xlu0 %v445
        %v447 = vpop.xlane.xlu0 %446
        %v448 = vmax.f32 %v447, 1e-12
        %v449 = vrsqrt.pop %v448
        %v450 = vmul.f32 %v448, %v449
        %vm451 = vcmp.gt.s32.totalorder %v232, 5
        %v452 = vmul.f32 %v434, %v449
        %v453 = vsel %vm435, %v450, 0.0
        %v454 = vsel %vm451, %v452, %v453
        %v455 = vsel %vm451, %v452, 0.0
        %vm456 = vcmp.gt.s32.totalorder %v234, 5
        %v457 = vmul.f32 %v443, %v449
        %v458 = vsel %vm456, %v457, 0.0
        %v459 = vmul.f32 %v455, %v458
        %v460 = vsub.f32 %v429, %v459
        %v461 = vsel %vm430, %v454, %v460
        %462 = vst.msk [vmem:[#allocation2] sm:$0xff] %vm244, %v461
        %v463 = vld [vmem:[#allocation2] sm:$0xff]
        %vm464 = vcmp.eq.s32.totalorder %v234, 6
        %v465 = vsel %vm464, %v463, 0.0
        %v466 = vsel %vm244, %v465, 0.0
        %467 = vadd.xlane.f32.xlu0 %v466
        %v468 = vpop.xlane.xlu0 %467
        %vm469 = vcmp.eq.s32.totalorder %v232, 6
        %v470 = vsel %vm469, %v463, 0.0
        %v471 = vsel %vm244, %v470, 0.0
        %v472 = vrot.slane %v471, 4
        %v473 = vadd.f32 %v471, %v472
        %v474 = vrot.slane %v473, 2
        %v475 = vadd.f32 %v473, %v474
        %v476 = vrot.slane %v475, 1
        %v477 = vadd.f32 %v475, %v476
        %v478 = vsel %vm464, %v477, 0.0
        %v479 = vsel %vm244, %v478, 0.0
        %480 = vadd.xlane.f32.xlu0 %v479
        %v481 = vpop.xlane.xlu0 %480
        %v482 = vmax.f32 %v481, 1e-12
        %v483 = vrsqrt.pop %v482
        %v484 = vmul.f32 %v482, %v483
        %vm485 = vcmp.gt.s32.totalorder %v232, 6
        %v486 = vmul.f32 %v468, %v483
        %v487 = vsel %vm469, %v484, 0.0
        %v488 = vsel %vm485, %v486, %v487
        %v489 = vsel %vm485, %v486, 0.0
        %vm490 = vcmp.gt.s32.totalorder %v234, 6
        %v491 = vmul.f32 %v477, %v483
        %v492 = vsel %vm490, %v491, 0.0
        %v493 = vmul.f32 %v489, %v492
        %v494 = vsub.f32 %v463, %v493
        %v495 = vsel %vm464, %v488, %v494
        %496 = vst.msk [vmem:[#allocation2] sm:$0xff] %vm244, %v495
        %v497 = vld [vmem:[#allocation2] sm:$0xff]
        %vm498 = vcmp.eq.s32.totalorder %v234, 7
        %v499 = vsel %vm498, %v497, 0.0
        %v500 = vsel %vm244, %v499, 0.0
        %501 = vadd.xlane.f32.xlu0 %v500
        %v502 = vpop.xlane.xlu0 %501
        %vm503 = vcmp.eq.s32.totalorder %v232, 7
        %v504 = vsel %vm503, %v497, 0.0
        %v505 = vsel %vm244, %v504, 0.0
        %v506 = vrot.slane %v505, 4
        %v507 = vadd.f32 %v505, %v506
        %v508 = vrot.slane %v507, 2
        %v509 = vadd.f32 %v507, %v508
        %v510 = vrot.slane %v509, 1
        %v511 = vadd.f32 %v509, %v510
        %v512 = vsel %vm498, %v511, 0.0
        %v513 = vsel %vm244, %v512, 0.0
        %514 = vadd.xlane.f32.xlu0 %v513
        %v515 = vpop.xlane.xlu0 %514
        %v516 = vmax.f32 %v515, 1e-12
        %v517 = vrsqrt.pop %v516
        %v518 = vmul.f32 %v516, %v517
        %vm519 = vcmp.gt.s32.totalorder %v232, 7
        %v520 = vmul.f32 %v502, %v517
        %v521 = vsel %vm503, %v518, 0.0
        %v522 = vsel %vm519, %v520, %v521
        %v523 = vsel %vm519, %v520, 0.0
        %vm524 = vcmp.gt.s32.totalorder %v234, 7
        %v525 = vmul.f32 %v511, %v517
        %v526 = vsel %vm524, %v525, 0.0
        %v527 = vmul.f32 %v523, %v526
        %v528 = vsub.f32 %v497, %v527
        %v529 = vsel %vm498, %v522, %v528
        %530 = vst.msk [vmem:[#allocation2] sm:$0xff] %vm244, %v529
        %v531 = vld [vmem:[#allocation2] sm:$0xff]
        %v532 = vld [vmem:[%s199] sm:$0xff]
        %v534 = vsel %vm244, %v531, 0
        %536 = vmatprep.subr.mxu0 0.0
        %537 = vmatpush1.msra.mxu0 %v532
        %538 = vmatprep.subr.mxu0 0.0
        %539 = vmatpush1.msra.mxu0 0.0
        %540 = vmatprep.subr.mxu0 0.0
        %541 = vmatpush1.msra.mxu0 0.0
        %542 = vmatprep.subr.mxu0 0.0
        %543 = vmatpush1.msra.mxu0 0.0
        %544 = vmatprep.subr.mxu0 0.0
        %545 = vmatpush1.msra.mxu0 0.0
        %546 = vmatprep.subr.mxu0 0.0
        %547 = vmatpush1.msra.mxu0 0.0
        %548 = vmatprep.subr.mxu0 0.0
        %549 = vmatpush1.msra.mxu0 0.0
        %550 = vmatprep.subr.mxu0 0.0
        %551 = vmatpush1.msra.mxu0 0.0
        %552 = vmatprep.subr.mxu0 0.0
        %553 = vmatpush1.msra.mxu0 0.0
        %554 = vmatprep.subr.mxu0 0.0
        %555 = vmatpush1.msra.mxu0 0.0
        %556 = vmatprep.subr.mxu0 0.0
        %557 = vmatpush1.msra.mxu0 0.0
        %558 = vmatprep.subr.mxu0 0.0
        %559 = vmatpush1.msra.mxu0 0.0
        %560 = vmatprep.subr.mxu0 0.0
        %561 = vmatpush1.msra.mxu0 0.0
        %562 = vmatprep.subr.mxu0 0.0
        %563 = vmatpush1.msra.mxu0 0.0
        %564 = vmatprep.subr.mxu0 0.0
        %565 = vmatpush1.msra.mxu0 0.0
        %566 = vmatprep.subr.mxu0 0.0
        %567 = vmatpush1.msra.mxu0 0.0
        %568 = vmatprep.subr.mxu0 0.0
        %569 = vmatpush1.msra.mxu0 0.0
        %570 = vmatprep.subr.mxu0 0.0
        %571 = vmatpush1.msra.mxu0 0.0
        %572 = vmatprep.subr.mxu0 0.0
        %573 = vmatpush1.msra.mxu0 0.0
        %574 = vmatprep.subr.mxu0 0.0
        %575 = vmatpush1.msra.mxu0 0.0
        %576 = vmatprep.subr.mxu0 0.0
        %577 = vmatpush1.msra.mxu0 0.0
        %578 = vmatprep.subr.mxu0 0.0
        %579 = vmatpush1.msra.mxu0 0.0
        %580 = vmatprep.subr.mxu0 0.0
        %581 = vmatpush1.msra.mxu0 0.0
        %582 = vmatprep.subr.mxu0 0.0
        %583 = vmatpush1.msra.mxu0 0.0
        %584 = vmatprep.subr.mxu0 0.0
        %585 = vmatpush1.msra.mxu0 0.0
        %586 = vmatprep.subr.mxu0 0.0
        %587 = vmatpush1.msra.mxu0 0.0
        %588 = vmatprep.subr.mxu0 0.0
        %589 = vmatpush1.msra.mxu0 0.0
        %590 = vmatprep.subr.mxu0 0.0
        %591 = vmatpush1.msra.mxu0 0.0
        %592 = vmatprep.subr.mxu0 0.0
        %593 = vmatpush1.msra.mxu0 0.0
        %594 = vmatprep.subr.mxu0 0.0
        %595 = vmatpush1.msra.mxu0 0.0
        %596 = vmatprep.subr.mxu0 0.0
        %597 = vmatpush1.msra.mxu0 0.0
        %598 = vmatprep.subr.mxu0 0.0
        %599 = vmatpush1.msra.mxu0 0.0
        %600 = vmatprep.mubr.f32.mxu0 0.0
        %601 = vmatmul.mubr.f32.gmra.mrb[0].mxu0 %v534
        %v602 = vpop.f32.mrb[0].mxu0
        %v603 = vadd.f32 0.0, %v602
        %v604 = vpop.f32.mrb[0].mxu0
        %605 = vdwg.mxu0
        %606 = vst [vmem:[%s223] sm:$0xff] %v603
        %s607 = sand.u32 %s87, 1
        %s608 = scalar_lea.sflag [#allocation5], %s607
        %s609 = sand.u32 %s87, 1
        %s610 = smul.addr %s609, 8
        %s611 = scalar_lea.vmem [#allocation8], %s610
        %s612 = sand.u32 %s113, 1
        %s613 = scalar_lea.sflag [#allocation10], %s612
        %s614 = sand.u32 %s113, 1
        %s615 = smul.addr %s614, 8
        %s616 = scalar_lea.vmem [#allocation9], %s615
        // Predicated region
        $region37: #{tpu_custom_call.1} parent=27 // pred_check
          %p617 = pneg %p97
        $region38: #{tpu_custom_call.1} parent=27 // pred_check_branch
          %619 = sbr.rel (%p617) target = $region40
        $region39: #{tpu_custom_call.1} parent=27 // pred_region
          %s621 = ssub.s32 128, 128
          %622 = vsyncadd %s608, %s621
          %s623 = smul.addr %s27, 128
          %s624 = scalar_lea.hbm %s2, %s623
          %s626 = sshll.u32 %s611, 4
          %s627 = int_to_ptr.vmem [resolvable:$true] %s626
          %629 = dma.vmem_to_hbm [thread:$0]  %s627, 128, %s624, %s608
        $region40: #{tpu_custom_call.1} parent=27 // pred_fallthru
          _
        // Predicated region
        $region41: #{tpu_custom_call.1} parent=27 // pred_check
          %p630 = pneg %p123
        $region42: #{tpu_custom_call.1} parent=27 // pred_check_branch
          %632 = sbr.rel (%p630) target = $region44
        $region43: #{tpu_custom_call.1} parent=27 // pred_region
          %s634 = ssub.s32 128, 128
          %635 = vsyncadd %s613, %s634
          %s636 = smul.addr %s27, 128
          %s637 = scalar_lea.hbm %s3, %s636
          %s639 = sshll.u32 %s616, 4
          %s640 = int_to_ptr.vmem [resolvable:$true] %s639
          %642 = dma.vmem_to_hbm [thread:$0]  %s640, 128, %s637, %s613
        $region44: #{tpu_custom_call.1} parent=27 // pred_fallthru
          _
      $region28: #{tpu_custom_call.1} parent=5 // pred_fallthru
        _
      %p643 = scmp.le.s32.totalorder 2, %s22
      // Predicated region
      $region45: #{tpu_custom_call.1} parent=5 // pred_check
        %p644 = pneg %p643
      $region46: #{tpu_custom_call.1} parent=5 // pred_check_branch
        %646 = sbr.rel (%p644) target = $region48
      $region47: #{tpu_custom_call.1} parent=5 // pred_region
        %s647 = ssub.s32 %s22, 2
        // Predicated region
        $region49: #{tpu_custom_call.1} parent=47 // pred_check
          %p648 = pneg %p103
        $region50: #{tpu_custom_call.1} parent=47 // pred_check_branch
          %650 = sbr.rel (%p648) target = $region52
        $region51: #{tpu_custom_call.1} parent=47 // pred_region
          %s651 = sand.u32 %s88, 1
          %s652 = scalar_lea.sflag [#allocation5], %s651
          %s653 = sand.u32 %s88, 1
          %s654 = smul.addr %s653, 8
          %s655 = scalar_lea.vmem [#allocation8], %s654
          %656 = dma.done %s652, 128
        $region52: #{tpu_custom_call.1} parent=47 // pred_fallthru
          _
        // Predicated region
        $region53: #{tpu_custom_call.1} parent=47 // pred_check
          %p657 = pneg %p129
        $region54: #{tpu_custom_call.1} parent=47 // pred_check_branch
          %659 = sbr.rel (%p657) target = $region56
        $region55: #{tpu_custom_call.1} parent=47 // pred_region
          %s660 = sand.u32 %s114, 1
          %s661 = scalar_lea.sflag [#allocation10], %s660
          %s662 = sand.u32 %s114, 1
          %s663 = smul.addr %s662, 8
          %s664 = scalar_lea.vmem [#allocation9], %s663
          %665 = dma.done %s661, 128
        $region56: #{tpu_custom_call.1} parent=47 // pred_fallthru
          _
      $region48: #{tpu_custom_call.1} parent=5 // pred_fallthru
        _
    $region6: #{tpu_custom_call.1} parent=1 // loop_footer
      %s26 = sadd.s32 1, %s22
    $region7: #{tpu_custom_call.1} parent=1 // loop_footer_branch
      %21 = sbr.rel target = $region3
    $region8: #{tpu_custom_call.1} parent=1 // loop_exit
      _
    %666 = vsyncpa [#allocation4], 1
    %s667 = scalar_lea.sflag [#allocation4], 1
    %668 = vsyncpa %s667, 1
    %669 = vsyncpa [#allocation7], 1
    %s670 = scalar_lea.sflag [#allocation7], 1
    %671 = vsyncpa %s670, 1
    %672 = vsyncpa [#allocation5], 1
    %s673 = scalar_lea.sflag [#allocation5], 1
    %674 = vsyncpa %s673, 1
    %675 = vsyncpa [#allocation10], 1
    %s676 = scalar_lea.sflag [#allocation10], 1
    %677 = vsyncpa %s676, 1

</llo_original>
